<compile_context>
chip_gen: v7x
topology: tpu7x:2x2x1
jax: 0.10.0
libtpu: 0.0.40
codegen_flags: <defaults>
</compile_context>

<pallas_src>
import functools

import numpy as np

import jax
import jax.numpy as jnp
from jax import lax
from jax.experimental import pallas as pl
from jax.experimental.pallas import tpu as pltpu


# ----------------------------------------------------------------------------
# Pallas kernel: Res_AM forward for one (c1, Npad) slab of Bt batch segments.
# ----------------------------------------------------------------------------
def _res_am_kernel(xs_ref, w0sc_ref, b0sc_ref, vmask_ref, wc_ref, wl_ref,
                   wr_ref, bconv_ref, bns_ref, bnb_ref, wf1_ref, bnhs_ref,
                   bnhb_ref, wf2_ref, bngs_ref, bngb_ref, pmat_ref, emat_ref,
                   out_ref, pad_ref, *, dils, c_p, c2, D, Dh, N):
    f32 = jnp.float32
    cdt = pad_ref.dtype                                   # conv compute dtype (bf16)

    # cv0 (1x1, stride s) + shortcut 1x1 strided conv fused in ONE MXU matmul.
    y0 = jnp.dot(w0sc_ref[...], xs_ref[...], preferred_element_type=f32)
    y0 = y0 + b0sc_ref[...]
    vmask = vmask_ref[...]                                # (1, N): 1 on valid columns
    x0 = y0[:c_p] * vmask                                 # per-element halos -> exact 0
    out = y0[c_p:]                                        # (c2, N) shortcut path (f32)

    # Stage x0 in the scratch so each dilated tap is a cheap static slice.
    # Only the D-wide strips adjacent to the interior are ever read by the
    # taps; zero them every step (tiny, and megacore-safe unlike a
    # program_id==0 one-shot init with "parallel" grid semantics).
    zstrip = jnp.zeros((c_p, D), cdt)
    pad_ref[:, Dh - D:Dh] = zstrip
    pad_ref[:, Dh + N:Dh + N + D] = zstrip
    x0c = x0.astype(cdt)
    pad_ref[:, Dh:Dh + N] = x0c

    # Center taps of cv1/cv2/cv3 fused in one matmul (uses the in-register x0).
    ctr = jnp.dot(wc_ref[...], x0c, preferred_element_type=f32)      # (3*c2, N)

    wl = wl_ref[...]
    wr = wr_ref[...]
    bconv = bconv_ref[...]
    bns = bns_ref[...]
    bnb = bnb_ref[...]
    pmat = pmat_ref[...]                                  # (N, Bt) per-element avg pool
    wf1 = wf1_ref[...]                                    # (3, chid, c2)

    convs = []
    hs = None
    for i, d in enumerate(dils):                          # cv1 / cv2 / cv3
        ci = (ctr[i * c2:(i + 1) * c2]
              + jnp.dot(wl[i], pad_ref[:, Dh - d:Dh - d + N],
                        preferred_element_type=f32)
              + jnp.dot(wr[i], pad_ref[:, Dh + d:Dh + d + N],
                        preferred_element_type=f32)
              + bconv[i])                                 # raw conv output (pre-BN)
        convs.append(ci)
        yi = jnp.maximum(ci * bns[i] + bnb[i], 0.0)       # eval-mode BN + ReLU
        mi = jnp.dot(yi, pmat, preferred_element_type=f32)            # (c2, Bt)
        hi = jnp.dot(wf1[i], mi, preferred_element_type=f32)          # (chid, Bt)
        hs = hi if hs is None else hs + hi

    # SE / fc gating, one column per batch element, all in f32.
    hs = jnp.maximum(hs * bnhs_ref[...] + bnhb_ref[...], 0.0)         # BN + ReLU
    g = jnp.dot(wf2_ref[...], hs, preferred_element_type=f32)         # (3*c2, Bt)
    g = g * bngs_ref[...] + bngb_ref[...]
    g = pl.reciprocal(1.0 + jnp.exp(-g), approx=True)     # sigmoid: exp + rcp on EUP

    # Broadcast each element's gate across its segment columns (tiny matmul).
    gc = jnp.dot(g, emat_ref[...], preferred_element_type=f32)        # (3*c2, N)
    for i in range(3):
        out = out + convs[i] * gc[i * c2:(i + 1) * c2]

    out_ref[...] = out.astype(out_ref.dtype)


# ----------------------------------------------------------------------------
# Wrapper: batch/lane packing, constant pool/expand matrices, pallas_call.
# ----------------------------------------------------------------------------
def res_am_forward(x, packed, *, s, dils, lane_target=512,
                   conv_dtype=jnp.bfloat16):
    B, c1, L = x.shape
    D = max(dils)
    xs = x[:, :, ::s]                     # stride-s sampling; fused by XLA into the
    Lp = xs.shape[2]                      # single pack/pad/transpose copy below
    S = Lp + 2 * D

    (w0sc, b0sc, wc, wl, wr, bconv, bns, bnb,
     wf1, bnhs, bnhb, wf2, bngs, bngb) = packed
    c2 = int(bconv.shape[1])
    c_p = int(wc.shape[1])
    chid = int(wf2.shape[1])

    # Batch-block size: pack Bt batch segments onto the lane axis, keep >= 2
    # grid steps when possible (v7x has 2 TensorCores; neutral on v5e/v6e).
    Bt = max(1, min(B, lane_target // S))
    G = pl.cdiv(B, Bt)
    if G < 2 and B >= 2:
        Bt = -(-B // 2)
        G = pl.cdiv(B, Bt)
    Bpad = G * Bt
    N = Bt * S
    Npad = -(-N // 128) * 128             # lane-dense blocks (unmasked vst)
    Dh = -(-D // 128) * 128               # left halo width; keeps interior aligned

    # Packed input slab (c1, G*Npad): per-element zero halos + zero tail pad.
    xsp = jnp.pad(xs.astype(conv_dtype), ((0, Bpad - B), (0, 0), (D, D)))
    xsp = xsp.transpose(1, 0, 2).reshape(c1, G, N)
    xsp = jnp.pad(xsp, ((0, 0), (0, 0), (0, Npad - N))).reshape(c1, G * Npad)

    # Block-local constant matrices: valid-column mask, avg-pool, gate expand.
    col = np.arange(Npad)
    elem = col // S
    loc = col - elem * S
    valid = (col < N) & (loc >= D) & (loc < D + Lp)
    vmask = jnp.asarray(valid.astype(np.float32))[None, :]            # (1, Npad)
    pmat_np = np.zeros((Npad, Bt), np.float32)
    pmat_np[col[valid], elem[valid]] = 1.0 / Lp
    emat_np = np.zeros((Bt, Npad), np.float32)
    inseg = col < N
    emat_np[elem[inseg], col[inseg]] = 1.0
    pmat = jnp.asarray(pmat_np)
    emat = jnp.asarray(emat_np)

    params = (w0sc, b0sc, vmask, wc, wl, wr, bconv, bns, bnb,
              wf1, bnhs, bnhb, wf2, bngs, bngb, pmat, emat)

    def whole(a):  # un-tiled grid-invariant parameter: full block, fixed index
        return pl.BlockSpec(a.shape, lambda b, n=a.ndim: (0,) * n)

    in_specs = [pl.BlockSpec((c1, Npad), lambda b: (0, b))] + [
        whole(a) for a in params
    ]

    kern = functools.partial(_res_am_kernel, dils=tuple(dils),
                             c_p=c_p, c2=c2, D=D, Dh=Dh, N=Npad)

    # Advisory cost estimate.
    isz = jnp.dtype(conv_dtype).itemsize
    param_bytes = sum(int(a.size) * jnp.dtype(a.dtype).itemsize for a in params)
    per_col = (2 * (c_p + c2) * c1        # fused cv0 + shortcut
               + 2 * 3 * c2 * c_p         # fused center taps
               + 4 * 3 * c2 * c_p         # left/right taps
               + 2 * 3 * c2 * Bt          # avg pool
               + 2 * 3 * c2 * Bt          # gate expand
               + 12 * c2)                 # elementwise
    cost = pl.CostEstimate(
        flops=int(G * Npad * per_col + G * 4 * chid * 3 * c2 * Bt),
        transcendentals=int(3 * c2 * Bpad),
        bytes_accessed=int(xsp.size * isz + G * Npad * c2 * 4 + param_bytes))

    out = pl.pallas_call(
        kern,
        out_shape=jax.ShapeDtypeStruct((c2, G * Npad), jnp.float32),
        grid=(G,),
        in_specs=in_specs,
        out_specs=pl.BlockSpec((c2, Npad), lambda b: (0, b)),
        scratch_shapes=[pltpu.VMEM((c_p, Npad + 2 * Dh), conv_dtype)],
        compiler_params=pltpu.CompilerParams(dimension_semantics=("parallel",)),
        cost_estimate=cost,
    )(xsp, *params)

    # (c2, G*Npad) -> PyTorch NCL (B, c2, Lp).
    out = out.reshape(c2, G, Npad)[:, :, :N].reshape(c2, Bpad, S)
    return out[:, :B, D:D + Lp].transpose(1, 0, 2)


# ----------------------------------------------------------------------------
# Deterministic parameter construction (synthetic; matches module __init__ shapes).
# ----------------------------------------------------------------------------
def make_params(key, c1, c2, s, k, r, c):
    c_ = max(c1 // r, c)
    chid = max(3 * c2 // r, c)
    ks = list(jax.random.split(key, 40))
    it = iter(ks)

    def nrm(shape, sc=0.3):
        return sc * jax.random.normal(next(it), shape, jnp.float32)

    def uni(shape, lo, hi):
        return jax.random.uniform(next(it), shape, jnp.float32, lo, hi)

    p = {}
    p['W0'] = nrm((c_, c1, 1));  p['b0'] = nrm((c_,), 0.1)
    for i in range(3):
        p[f'W{i + 1}'] = nrm((c2, c_, k));  p[f'b{i + 1}'] = nrm((c2,), 0.1)
    p['bn_g'] = uni((3 * c2,), 0.5, 1.5);  p['bn_b'] = nrm((3 * c2,), 0.1)
    p['bn_m'] = nrm((3 * c2,), 0.1);       p['bn_v'] = uni((3 * c2,), 0.5, 1.5)
    p['Wsc'] = nrm((c2, c1, 1)); p['bsc'] = nrm((c2,), 0.1)
    p['fc1'] = nrm((chid, 3 * c2))
    p['bnh_g'] = uni((chid,), 0.5, 1.5);   p['bnh_b'] = nrm((chid,), 0.1)
    p['bnh_m'] = nrm((chid,), 0.1);        p['bnh_v'] = uni((chid,), 0.5, 1.5)
    p['fc2'] = nrm((3 * c2, chid))
    p['bng_g'] = uni((3 * c2,), 0.5, 1.5); p['bng_b'] = nrm((3 * c2,), 0.1)
    p['bng_m'] = nrm((3 * c2,), 0.1);      p['bng_v'] = uni((3 * c2,), 0.5, 1.5)
    return p, c_, chid


def _bn_fold(g, b, m, v, eps=1e-5):
    scale = g / jnp.sqrt(v + eps)
    return scale, b - m * scale


def pack_params(p, c1, c2, c_, chid, conv_dtype=jnp.bfloat16):
    """Repack PyTorch-shaped params into the kernel's channels-first layout."""
    # Pad the x0 channel dim for sublane packing: 16 for bf16, 8 for f32.
    mult = 16 if conv_dtype == jnp.bfloat16 else 8
    c_p = ((c_ + mult - 1) // mult) * mult

    # cv0 + shortcut fused along the output-channel (row) dim: (c_p + c2, c1).
    # NOTE: an identity shortcut (c1 == c2 and s == 1) maps to Wsc = I, bsc = 0.
    w0p = jnp.zeros((c_p, c1), jnp.float32).at[:c_].set(p['W0'][:, :, 0])
    w0sc = jnp.concatenate([w0p, p['Wsc'][:, :, 0]], axis=0).astype(conv_dtype)
    b0p = jnp.zeros((c_p, 1), jnp.float32).at[:c_, 0].set(p['b0'])
    b0sc = jnp.concatenate([b0p, p['bsc'][:, None]], axis=0)          # f32

    # Dilated convs: fused center taps (3*c2, c_p); left/right taps (3, c2, c_p).
    Wl, Wc, Wr = [], [], []
    for i in range(3):
        W = p[f'W{i + 1}']                                            # (c2, c_, 3)
        Wp = jnp.zeros((c2, c_p, 3), jnp.float32).at[:, :c_, :].set(W)
        Wl.append(Wp[:, :, 0]); Wc.append(Wp[:, :, 1]); Wr.append(Wp[:, :, 2])
    wc = jnp.concatenate(Wc, axis=0).astype(conv_dtype)               # (3*c2, c_p)
    wl = jnp.stack(Wl).astype(conv_dtype)                             # (3, c2, c_p)
    wr = jnp.stack(Wr).astype(conv_dtype)
    bconv = jnp.stack([p[f'b{i + 1}'][:, None] for i in range(3)])    # (3, c2, 1)

    s1, t1 = _bn_fold(p['bn_g'], p['bn_b'], p['bn_m'], p['bn_v'])
    bns, bnb = s1.reshape(3, c2, 1), t1.reshape(3, c2, 1)
    wf1 = p['fc1'].reshape(chid, 3, c2).transpose(1, 0, 2)            # (3, chid, c2)
    s2, t2 = _bn_fold(p['bnh_g'], p['bnh_b'], p['bnh_m'], p['bnh_v'])
    bnhs, bnhb = s2[:, None], t2[:, None]                             # (chid, 1)
    wf2 = p['fc2']                                                    # (3*c2, chid)
    s3, t3 = _bn_fold(p['bng_g'], p['bng_b'], p['bng_m'], p['bng_v'])
    bngs, bngb = s3[:, None], t3[:, None]                             # (3*c2, 1)
    return (w0sc, b0sc, wc, wl, wr, bconv, bns, bnb,
            wf1, bnhs, bnhb, wf2, bngs, bngb)


# ----------------------------------------------------------------------------
# Pure-JAX reference (mirrors the PyTorch forward, eval-mode BN) for checking.
# ----------------------------------------------------------------------------
def _conv1d_ref(x, w, b, stride=1, padding=0, dilation=1):
    dn = lax.conv_dimension_numbers(x.shape, w.shape, ('NCH', 'OIH', 'NCH'))
    y = lax.conv_general_dilated(x, w, (stride,), [(padding, padding)],
                                 rhs_dilation=(dilation,), dimension_numbers=dn)
    return y + b[None, :, None]


def res_am_ref(x, p, *, s, dils):
    d1, d2, d3 = dils
    x0 = _conv1d_ref(x, p['W0'], p['b0'], stride=s)
    x1 = _conv1d_ref(x0, p['W1'], p['b1'], padding=d1, dilation=d1)
    x2 = _conv1d_ref(x0, p['W2'], p['b2'], padding=d2, dilation=d2)
    x3 = _conv1d_ref(x0, p['W3'], p['b3'], padding=d3, dilation=d3)
    xc = jnp.concatenate([x1, x2, x3], axis=1)
    sc1, sh1 = _bn_fold(p['bn_g'], p['bn_b'], p['bn_m'], p['bn_v'])
    y = jax.nn.relu(xc * sc1[None, :, None] + sh1[None, :, None])
    avg = jnp.mean(y, axis=2)
    h = avg @ p['fc1'].T
    sc2, sh2 = _bn_fold(p['bnh_g'], p['bnh_b'], p['bnh_m'], p['bnh_v'])
    h = jax.nn.relu(h * sc2 + sh2)
    g = h @ p['fc2'].T
    sc3, sh3 = _bn_fold(p['bng_g'], p['bng_b'], p['bng_m'], p['bng_v'])
    g = jax.nn.sigmoid(g * sc3 + sh3)
    c2 = p['W1'].shape[0]
    g1, g2, g3 = g[:, :c2], g[:, c2:2 * c2], g[:, 2 * c2:]
    shc = _conv1d_ref(x, p['Wsc'], p['bsc'], stride=s)
    return x1 * g1[:, :, None] + x2 * g2[:, :, None] + x3 * g3[:, :, None] + shc


if __name__ == "__main__":
    # Small config consistent with Res_AM(c1=16, c2=8): c_=4, L'=8, 3*c2=24, c__=4.
    B, c1, c2, L = 2, 16, 8, 16
    s, k, r, c = 2, 3, 16, 4
    dils = (1, 2, 4)

    key = jax.random.PRNGKey(0)
    kx, kp = jax.random.split(key)
    x = jax.random.normal(kx, (B, c1, L), jnp.float32)

    params, c_, chid = make_params(kp, c1, c2, s, k, r, c)
    packed = pack_params(params, c1, c2, c_, chid)

    out = res_am_forward(x, packed, s=s, dils=dils)
    out = jax.block_until_ready(out)

    ref = res_am_ref(x, params, s=s, dils=dils)
    assert out.shape == ref.shape, (out.shape, ref.shape)
    if not jnp.allclose(out, ref, atol=5e-2, rtol=5e-2):
        raise AssertionError(
            f"Pallas/reference mismatch, max abs err = {jnp.max(jnp.abs(out - ref))}")
    print("KERNEL_OK")
</pallas_src>

<mosaic_0001>
module attributes {stable_mosaic.version = 11 : i64} {
  func.func @_res_am_kernel(%arg0: i32, %arg1: memref<16x128xbf16, #tpu.memory_space<vmem>>, %arg2: memref<24x16xbf16, #tpu.memory_space<vmem>>, %arg3: memref<24x1xf32, #tpu.memory_space<vmem>>, %arg4: memref<1x128xf32, #tpu.memory_space<vmem>>, %arg5: memref<24x16xbf16, #tpu.memory_space<vmem>>, %arg6: memref<3x8x16xbf16, #tpu.memory_space<vmem>>, %arg7: memref<3x8x16xbf16, #tpu.memory_space<vmem>>, %arg8: memref<3x8x1xf32, #tpu.memory_space<vmem>>, %arg9: memref<3x8x1xf32, #tpu.memory_space<vmem>>, %arg10: memref<3x8x1xf32, #tpu.memory_space<vmem>>, %arg11: memref<3x4x8xf32, #tpu.memory_space<vmem>>, %arg12: memref<4x1xf32, #tpu.memory_space<vmem>>, %arg13: memref<4x1xf32, #tpu.memory_space<vmem>>, %arg14: memref<24x4xf32, #tpu.memory_space<vmem>>, %arg15: memref<24x1xf32, #tpu.memory_space<vmem>>, %arg16: memref<24x1xf32, #tpu.memory_space<vmem>>, %arg17: memref<128x1xf32, #tpu.memory_space<vmem>>, %arg18: memref<1x128xf32, #tpu.memory_space<vmem>>, %arg19: memref<8x128xf32, #tpu.memory_space<vmem>>, %arg20: memref<16x384xbf16, #tpu.memory_space<vmem>>) attributes {dimension_semantics = [#tpu.dimension_semantics<parallel>], iteration_bounds = array<i64: 2>, scalar_prefetch = 0 : i64, scratch_operands = 1 : i64, tpu.core_type = #tpu.core_type<tc>, window_params = [{transform_indices = @transform_0, window_bounds = array<i64: 16, 128>}, {pipeline_mode = #tpu.pipeline_mode<synchronous>, transform_indices = @transform_1, window_bounds = array<i64: 24, 16>}, {pipeline_mode = #tpu.pipeline_mode<synchronous>, transform_indices = @transform_2, window_bounds = array<i64: 24, 1>}, {pipeline_mode = #tpu.pipeline_mode<synchronous>, transform_indices = @transform_3, window_bounds = array<i64: 1, 128>}, {pipeline_mode = #tpu.pipeline_mode<synchronous>, transform_indices = @transform_4, window_bounds = array<i64: 24, 16>}, {pipeline_mode = #tpu.pipeline_mode<synchronous>, transform_indices = @transform_5, window_bounds = array<i64: 3, 8, 16>}, {pipeline_mode = #tpu.pipeline_mode<synchronous>, transform_indices = @transform_6, window_bounds = array<i64: 3, 8, 16>}, {pipeline_mode = #tpu.pipeline_mode<synchronous>, transform_indices = @transform_7, window_bounds = array<i64: 3, 8, 1>}, {pipeline_mode = #tpu.pipeline_mode<synchronous>, transform_indices = @transform_8, window_bounds = array<i64: 3, 8, 1>}, {pipeline_mode = #tpu.pipeline_mode<synchronous>, transform_indices = @transform_9, window_bounds = array<i64: 3, 8, 1>}, {pipeline_mode = #tpu.pipeline_mode<synchronous>, transform_indices = @transform_10, window_bounds = array<i64: 3, 4, 8>}, {pipeline_mode = #tpu.pipeline_mode<synchronous>, transform_indices = @transform_11, window_bounds = array<i64: 4, 1>}, {pipeline_mode = #tpu.pipeline_mode<synchronous>, transform_indices = @transform_12, window_bounds = array<i64: 4, 1>}, {pipeline_mode = #tpu.pipeline_mode<synchronous>, transform_indices = @transform_13, window_bounds = array<i64: 24, 4>}, {pipeline_mode = #tpu.pipeline_mode<synchronous>, transform_indices = @transform_14, window_bounds = array<i64: 24, 1>}, {pipeline_mode = #tpu.pipeline_mode<synchronous>, transform_indices = @transform_15, window_bounds = array<i64: 24, 1>}, {pipeline_mode = #tpu.pipeline_mode<synchronous>, transform_indices = @transform_16, window_bounds = array<i64: 128, 1>}, {pipeline_mode = #tpu.pipeline_mode<synchronous>, transform_indices = @transform_17, window_bounds = array<i64: 1, 128>}, {transform_indices = @transform_18, window_bounds = array<i64: 8, 128>}]} {
    %c0 = arith.constant 0 : index
    %c0_0 = arith.constant 0 : index
    %0 = vector.load %arg2[%c0, %c0_0] : memref<24x16xbf16, #tpu.memory_space<vmem>>, vector<24x16xbf16>
    %c0_1 = arith.constant 0 : index
    %c0_2 = arith.constant 0 : index
    %1 = vector.load %arg1[%c0_1, %c0_2] : memref<16x128xbf16, #tpu.memory_space<vmem>>, vector<16x128xbf16>
    %cst = arith.constant dense<0.000000e+00> : vector<24x128xf32>
    %2 = tpu.matmul %0, %1, %cst {dimension_numbers = #tpu.dot_dimension_numbers<[1], [0], [0], [1], [0, 0, 1, 1], [], []>} : vector<24x16xbf16>, vector<16x128xbf16>, vector<24x128xf32> -> vector<24x128xf32>
    %c0_3 = arith.constant 0 : index
    %c0_4 = arith.constant 0 : index
    %3 = vector.load %arg3[%c0_3, %c0_4] : memref<24x1xf32, #tpu.memory_space<vmem>>, vector<24x1xf32>
    %4 = vector.broadcast %3 : vector<24x1xf32> to vector<24x128xf32>
    %5 = arith.addf %2, %4 : vector<24x128xf32>
    %c0_5 = arith.constant 0 : index
    %c0_6 = arith.constant 0 : index
    %6 = vector.load %arg4[%c0_5, %c0_6] : memref<1x128xf32, #tpu.memory_space<vmem>>, vector<1x128xf32>
    %7 = vector.extract_strided_slice %5 {offsets = [0, 0], sizes = [16, 128], strides = [1, 1]} : vector<24x128xf32> to vector<16x128xf32>
    %8 = vector.broadcast %6 : vector<1x128xf32> to vector<16x128xf32>
    %9 = arith.mulf %7, %8 : vector<16x128xf32>
    %10 = vector.extract_strided_slice %5 {offsets = [16, 0], sizes = [8, 128], strides = [1, 1]} : vector<24x128xf32> to vector<8x128xf32>
    %cst_7 = arith.constant 0.000000e+00 : bf16
    %11 = vector.broadcast %cst_7 : bf16 to vector<16x4xbf16>
    %c0_8 = arith.constant 0 : index
    %c124 = arith.constant 124 : index
    %12 = vector.load %arg20[%c0_8, %c124] : memref<16x384xbf16, #tpu.memory_space<vmem>>, vector<16x4xbf16>
    tpu.vector_store %arg20[%c0_8, %c124], %11 {strides = array<i32>} : memref<16x384xbf16, #tpu.memory_space<vmem>>, vector<16x4xbf16>,
    %c0_9 = arith.constant 0 : index
    %c256 = arith.constant 256 : index
    %13 = vector.load %arg20[%c0_9, %c256] : memref<16x384xbf16, #tpu.memory_space<vmem>>, vector<16x4xbf16>
    tpu.vector_store %arg20[%c0_9, %c256], %11 {strides = array<i32>} : memref<16x384xbf16, #tpu.memory_space<vmem>>, vector<16x4xbf16>,
    %14 = arith.truncf %9 : vector<16x128xf32> to vector<16x128xbf16>
    %c0_10 = arith.constant 0 : index
    %c128 = arith.constant 128 : index
    %15 = vector.load %arg20[%c0_10, %c128] : memref<16x384xbf16, #tpu.memory_space<vmem>>, vector<16x128xbf16>
    tpu.vector_store %arg20[%c0_10, %c128], %14 {strides = array<i32>} : memref<16x384xbf16, #tpu.memory_space<vmem>>, vector<16x128xbf16>,
    %c0_11 = arith.constant 0 : index
    %c0_12 = arith.constant 0 : index
    %16 = vector.load %arg5[%c0_11, %c0_12] : memref<24x16xbf16, #tpu.memory_space<vmem>>, vector<24x16xbf16>
    %cst_13 = arith.constant dense<0.000000e+00> : vector<24x128xf32>
    %17 = tpu.matmul %16, %14, %cst_13 {dimension_numbers = #tpu.dot_dimension_numbers<[1], [0], [0], [1], [0, 0, 1, 1], [], []>} : vector<24x16xbf16>, vector<16x128xbf16>, vector<24x128xf32> -> vector<24x128xf32>
    %c0_14 = arith.constant 0 : index
    %c0_15 = arith.constant 0 : index
    %c0_16 = arith.constant 0 : index
    %18 = vector.load %arg6[%c0_14, %c0_15, %c0_16] : memref<3x8x16xbf16, #tpu.memory_space<vmem>>, vector<3x8x16xbf16>
    %c0_17 = arith.constant 0 : index
    %c0_18 = arith.constant 0 : index
    %c0_19 = arith.constant 0 : index
    %19 = vector.load %arg7[%c0_17, %c0_18, %c0_19] : memref<3x8x16xbf16, #tpu.memory_space<vmem>>, vector<3x8x16xbf16>
    %c0_20 = arith.constant 0 : index
    %c0_21 = arith.constant 0 : index
    %c0_22 = arith.constant 0 : index
    %20 = vector.load %arg8[%c0_20, %c0_21, %c0_22] : memref<3x8x1xf32, #tpu.memory_space<vmem>>, vector<3x8x1xf32>
    %c0_23 = arith.constant 0 : index
    %c0_24 = arith.constant 0 : index
    %c0_25 = arith.constant 0 : index
    %21 = vector.load %arg9[%c0_23, %c0_24, %c0_25] : memref<3x8x1xf32, #tpu.memory_space<vmem>>, vector<3x8x1xf32>
    %c0_26 = arith.constant 0 : index
    %c0_27 = arith.constant 0 : index
    %c0_28 = arith.constant 0 : index
    %22 = vector.load %arg10[%c0_26, %c0_27, %c0_28] : memref<3x8x1xf32, #tpu.memory_space<vmem>>, vector<3x8x1xf32>
    %c0_29 = arith.constant 0 : index
    %c0_30 = arith.constant 0 : index
    %23 = vector.load %arg17[%c0_29, %c0_30] : memref<128x1xf32, #tpu.memory_space<vmem>>, vector<128x1xf32>
    %c0_31 = arith.constant 0 : index
    %c0_32 = arith.constant 0 : index
    %c0_33 = arith.constant 0 : index
    %24 = vector.load %arg11[%c0_31, %c0_32, %c0_33] : memref<3x4x8xf32, #tpu.memory_space<vmem>>, vector<3x4x8xf32>
    %25 = vector.extract_strided_slice %17 {offsets = [0, 0], sizes = [8, 128], strides = [1, 1]} : vector<24x128xf32> to vector<8x128xf32>
    %26 = vector.extract_strided_slice %18 {offsets = [0, 0, 0], sizes = [1, 8, 16], strides = [1, 1, 1]} : vector<3x8x16xbf16> to vector<1x8x16xbf16>
    %27 = vector.shape_cast %26 : vector<1x8x16xbf16> to vector<8x16xbf16>
    %c0_34 = arith.constant 0 : index
    %c127 = arith.constant 127 : index
    %28 = vector.load %arg20[%c0_34, %c127] : memref<16x384xbf16, #tpu.memory_space<vmem>>, vector<16x128xbf16>
    %cst_35 = arith.constant dense<0.000000e+00> : vector<8x128xf32>
    %29 = tpu.matmul %27, %28, %cst_35 {dimension_numbers = #tpu.dot_dimension_numbers<[1], [0], [0], [1], [0, 0, 1, 1], [], []>} : vector<8x16xbf16>, vector<16x128xbf16>, vector<8x128xf32> -> vector<8x128xf32>
    %30 = arith.addf %25, %29 : vector<8x128xf32>
    %31 = vector.extract_strided_slice %19 {offsets = [0, 0, 0], sizes = [1, 8, 16], strides = [1, 1, 1]} : vector<3x8x16xbf16> to vector<1x8x16xbf16>
    %32 = vector.shape_cast %31 : vector<1x8x16xbf16> to vector<8x16xbf16>
    %c0_36 = arith.constant 0 : index
    %c129 = arith.constant 129 : index
    %33 = vector.load %arg20[%c0_36, %c129] : memref<16x384xbf16, #tpu.memory_space<vmem>>, vector<16x128xbf16>
    %cst_37 = arith.constant dense<0.000000e+00> : vector<8x128xf32>
    %34 = tpu.matmul %32, %33, %cst_37 {dimension_numbers = #tpu.dot_dimension_numbers<[1], [0], [0], [1], [0, 0, 1, 1], [], []>} : vector<8x16xbf16>, vector<16x128xbf16>, vector<8x128xf32> -> vector<8x128xf32>
    %35 = arith.addf %30, %34 : vector<8x128xf32>
    %36 = vector.extract_strided_slice %20 {offsets = [0, 0, 0], sizes = [1, 8, 1], strides = [1, 1, 1]} : vector<3x8x1xf32> to vector<1x8x1xf32>
    %37 = vector.shape_cast %36 : vector<1x8x1xf32> to vector<8x1xf32>
    %38 = vector.broadcast %37 : vector<8x1xf32> to vector<8x128xf32>
    %39 = arith.addf %35, %38 : vector<8x128xf32>
    %40 = vector.extract_strided_slice %21 {offsets = [0, 0, 0], sizes = [1, 8, 1], strides = [1, 1, 1]} : vector<3x8x1xf32> to vector<1x8x1xf32>
    %41 = vector.shape_cast %40 : vector<1x8x1xf32> to vector<8x1xf32>
    %42 = vector.broadcast %41 : vector<8x1xf32> to vector<8x128xf32>
    %43 = arith.mulf %39, %42 : vector<8x128xf32>
    %44 = vector.extract_strided_slice %22 {offsets = [0, 0, 0], sizes = [1, 8, 1], strides = [1, 1, 1]} : vector<3x8x1xf32> to vector<1x8x1xf32>
    %45 = vector.shape_cast %44 : vector<1x8x1xf32> to vector<8x1xf32>
    %46 = vector.broadcast %45 : vector<8x1xf32> to vector<8x128xf32>
    %47 = arith.addf %43, %46 : vector<8x128xf32>
    %cst_38 = arith.constant 0.000000e+00 : f32
    %48 = vector.broadcast %cst_38 : f32 to vector<8x128xf32>
    %49 = arith.maximumf %47, %48 : vector<8x128xf32>
    %cst_39 = arith.constant dense<0.000000e+00> : vector<8x1xf32>
    %50 = tpu.matmul %49, %23, %cst_39 {dimension_numbers = #tpu.dot_dimension_numbers<[1], [0], [0], [1], [0, 0, 1, 1], [], []>} : vector<8x128xf32>, vector<128x1xf32>, vector<8x1xf32> -> vector<8x1xf32>
    %51 = vector.extract_strided_slice %24 {offsets = [0, 0, 0], sizes = [1, 4, 8], strides = [1, 1, 1]} : vector<3x4x8xf32> to vector<1x4x8xf32>
    %52 = vector.shape_cast %51 : vector<1x4x8xf32> to vector<4x8xf32>
    %cst_40 = arith.constant dense<0.000000e+00> : vector<4x1xf32>
    %53 = tpu.matmul %52, %50, %cst_40 {dimension_numbers = #tpu.dot_dimension_numbers<[1], [0], [0], [1], [0, 0, 1, 1], [], []>} : vector<4x8xf32>, vector<8x1xf32>, vector<4x1xf32> -> vector<4x1xf32>
    %54 = vector.extract_strided_slice %17 {offsets = [8, 0], sizes = [8, 128], strides = [1, 1]} : vector<24x128xf32> to vector<8x128xf32>
    %55 = vector.extract_strided_slice %18 {offsets = [1, 0, 0], sizes = [1, 8, 16], strides = [1, 1, 1]} : vector<3x8x16xbf16> to vector<1x8x16xbf16>
    %56 = vector.shape_cast %55 : vector<1x8x16xbf16> to vector<8x16xbf16>
    %c0_41 = arith.constant 0 : index
    %c126 = arith.constant 126 : index
    %57 = vector.load %arg20[%c0_41, %c126] : memref<16x384xbf16, #tpu.memory_space<vmem>>, vector<16x128xbf16>
    %cst_42 = arith.constant dense<0.000000e+00> : vector<8x128xf32>
    %58 = tpu.matmul %56, %57, %cst_42 {dimension_numbers = #tpu.dot_dimension_numbers<[1], [0], [0], [1], [0, 0, 1, 1], [], []>} : vector<8x16xbf16>, vector<16x128xbf16>, vector<8x128xf32> -> vector<8x128xf32>
    %59 = arith.addf %54, %58 : vector<8x128xf32>
    %60 = vector.extract_strided_slice %19 {offsets = [1, 0, 0], sizes = [1, 8, 16], strides = [1, 1, 1]} : vector<3x8x16xbf16> to vector<1x8x16xbf16>
    %61 = vector.shape_cast %60 : vector<1x8x16xbf16> to vector<8x16xbf16>
    %c0_43 = arith.constant 0 : index
    %c130 = arith.constant 130 : index
    %62 = vector.load %arg20[%c0_43, %c130] : memref<16x384xbf16, #tpu.memory_space<vmem>>, vector<16x128xbf16>
    %cst_44 = arith.constant dense<0.000000e+00> : vector<8x128xf32>
    %63 = tpu.matmul %61, %62, %cst_44 {dimension_numbers = #tpu.dot_dimension_numbers<[1], [0], [0], [1], [0, 0, 1, 1], [], []>} : vector<8x16xbf16>, vector<16x128xbf16>, vector<8x128xf32> -> vector<8x128xf32>
    %64 = arith.addf %59, %63 : vector<8x128xf32>
    %65 = vector.extract_strided_slice %20 {offsets = [1, 0, 0], sizes = [1, 8, 1], strides = [1, 1, 1]} : vector<3x8x1xf32> to vector<1x8x1xf32>
    %66 = vector.shape_cast %65 : vector<1x8x1xf32> to vector<8x1xf32>
    %67 = vector.broadcast %66 : vector<8x1xf32> to vector<8x128xf32>
    %68 = arith.addf %64, %67 : vector<8x128xf32>
    %69 = vector.extract_strided_slice %21 {offsets = [1, 0, 0], sizes = [1, 8, 1], strides = [1, 1, 1]} : vector<3x8x1xf32> to vector<1x8x1xf32>
    %70 = vector.shape_cast %69 : vector<1x8x1xf32> to vector<8x1xf32>
    %71 = vector.broadcast %70 : vector<8x1xf32> to vector<8x128xf32>
    %72 = arith.mulf %68, %71 : vector<8x128xf32>
    %73 = vector.extract_strided_slice %22 {offsets = [1, 0, 0], sizes = [1, 8, 1], strides = [1, 1, 1]} : vector<3x8x1xf32> to vector<1x8x1xf32>
    %74 = vector.shape_cast %73 : vector<1x8x1xf32> to vector<8x1xf32>
    %75 = vector.broadcast %74 : vector<8x1xf32> to vector<8x128xf32>
    %76 = arith.addf %72, %75 : vector<8x128xf32>
    %cst_45 = arith.constant 0.000000e+00 : f32
    %77 = vector.broadcast %cst_45 : f32 to vector<8x128xf32>
    %78 = arith.maximumf %76, %77 : vector<8x128xf32>
    %cst_46 = arith.constant dense<0.000000e+00> : vector<8x1xf32>
    %79 = tpu.matmul %78, %23, %cst_46 {dimension_numbers = #tpu.dot_dimension_numbers<[1], [0], [0], [1], [0, 0, 1, 1], [], []>} : vector<8x128xf32>, vector<128x1xf32>, vector<8x1xf32> -> vector<8x1xf32>
    %80 = vector.extract_strided_slice %24 {offsets = [1, 0, 0], sizes = [1, 4, 8], strides = [1, 1, 1]} : vector<3x4x8xf32> to vector<1x4x8xf32>
    %81 = vector.shape_cast %80 : vector<1x4x8xf32> to vector<4x8xf32>
    %cst_47 = arith.constant dense<0.000000e+00> : vector<4x1xf32>
    %82 = tpu.matmul %81, %79, %cst_47 {dimension_numbers = #tpu.dot_dimension_numbers<[1], [0], [0], [1], [0, 0, 1, 1], [], []>} : vector<4x8xf32>, vector<8x1xf32>, vector<4x1xf32> -> vector<4x1xf32>
    %83 = arith.addf %53, %82 : vector<4x1xf32>
    %84 = vector.extract_strided_slice %17 {offsets = [16, 0], sizes = [8, 128], strides = [1, 1]} : vector<24x128xf32> to vector<8x128xf32>
    %85 = vector.extract_strided_slice %18 {offsets = [2, 0, 0], sizes = [1, 8, 16], strides = [1, 1, 1]} : vector<3x8x16xbf16> to vector<1x8x16xbf16>
    %86 = vector.shape_cast %85 : vector<1x8x16xbf16> to vector<8x16xbf16>
    %c0_48 = arith.constant 0 : index
    %c124_49 = arith.constant 124 : index
    %87 = vector.load %arg20[%c0_48, %c124_49] : memref<16x384xbf16, #tpu.memory_space<vmem>>, vector<16x128xbf16>
    %cst_50 = arith.constant dense<0.000000e+00> : vector<8x128xf32>
    %88 = tpu.matmul %86, %87, %cst_50 {dimension_numbers = #tpu.dot_dimension_numbers<[1], [0], [0], [1], [0, 0, 1, 1], [], []>} : vector<8x16xbf16>, vector<16x128xbf16>, vector<8x128xf32> -> vector<8x128xf32>
    %89 = arith.addf %84, %88 : vector<8x128xf32>
    %90 = vector.extract_strided_slice %19 {offsets = [2, 0, 0], sizes = [1, 8, 16], strides = [1, 1, 1]} : vector<3x8x16xbf16> to vector<1x8x16xbf16>
    %91 = vector.shape_cast %90 : vector<1x8x16xbf16> to vector<8x16xbf16>
    %c0_51 = arith.constant 0 : index
    %c132 = arith.constant 132 : index
    %92 = vector.load %arg20[%c0_51, %c132] : memref<16x384xbf16, #tpu.memory_space<vmem>>, vector<16x128xbf16>
    %cst_52 = arith.constant dense<0.000000e+00> : vector<8x128xf32>
    %93 = tpu.matmul %91, %92, %cst_52 {dimension_numbers = #tpu.dot_dimension_numbers<[1], [0], [0], [1], [0, 0, 1, 1], [], []>} : vector<8x16xbf16>, vector<16x128xbf16>, vector<8x128xf32> -> vector<8x128xf32>
    %94 = arith.addf %89, %93 : vector<8x128xf32>
    %95 = vector.extract_strided_slice %20 {offsets = [2, 0, 0], sizes = [1, 8, 1], strides = [1, 1, 1]} : vector<3x8x1xf32> to vector<1x8x1xf32>
    %96 = vector.shape_cast %95 : vector<1x8x1xf32> to vector<8x1xf32>
    %97 = vector.broadcast %96 : vector<8x1xf32> to vector<8x128xf32>
    %98 = arith.addf %94, %97 : vector<8x128xf32>
    %99 = vector.extract_strided_slice %21 {offsets = [2, 0, 0], sizes = [1, 8, 1], strides = [1, 1, 1]} : vector<3x8x1xf32> to vector<1x8x1xf32>
    %100 = vector.shape_cast %99 : vector<1x8x1xf32> to vector<8x1xf32>
    %101 = vector.broadcast %100 : vector<8x1xf32> to vector<8x128xf32>
    %102 = arith.mulf %98, %101 : vector<8x128xf32>
    %103 = vector.extract_strided_slice %22 {offsets = [2, 0, 0], sizes = [1, 8, 1], strides = [1, 1, 1]} : vector<3x8x1xf32> to vector<1x8x1xf32>
    %104 = vector.shape_cast %103 : vector<1x8x1xf32> to vector<8x1xf32>
    %105 = vector.broadcast %104 : vector<8x1xf32> to vector<8x128xf32>
    %106 = arith.addf %102, %105 : vector<8x128xf32>
    %cst_53 = arith.constant 0.000000e+00 : f32
    %107 = vector.broadcast %cst_53 : f32 to vector<8x128xf32>
    %108 = arith.maximumf %106, %107 : vector<8x128xf32>
    %cst_54 = arith.constant dense<0.000000e+00> : vector<8x1xf32>
    %109 = tpu.matmul %108, %23, %cst_54 {dimension_numbers = #tpu.dot_dimension_numbers<[1], [0], [0], [1], [0, 0, 1, 1], [], []>} : vector<8x128xf32>, vector<128x1xf32>, vector<8x1xf32> -> vector<8x1xf32>
    %110 = vector.extract_strided_slice %24 {offsets = [2, 0, 0], sizes = [1, 4, 8], strides = [1, 1, 1]} : vector<3x4x8xf32> to vector<1x4x8xf32>
    %111 = vector.shape_cast %110 : vector<1x4x8xf32> to vector<4x8xf32>
    %cst_55 = arith.constant dense<0.000000e+00> : vector<4x1xf32>
    %112 = tpu.matmul %111, %109, %cst_55 {dimension_numbers = #tpu.dot_dimension_numbers<[1], [0], [0], [1], [0, 0, 1, 1], [], []>} : vector<4x8xf32>, vector<8x1xf32>, vector<4x1xf32> -> vector<4x1xf32>
    %113 = arith.addf %83, %112 : vector<4x1xf32>
    %c0_56 = arith.constant 0 : index
    %c0_57 = arith.constant 0 : index
    %114 = vector.load %arg12[%c0_56, %c0_57] : memref<4x1xf32, #tpu.memory_space<vmem>>, vector<4x1xf32>
    %115 = arith.mulf %113, %114 : vector<4x1xf32>
    %c0_58 = arith.constant 0 : index
    %c0_59 = arith.constant 0 : index
    %116 = vector.load %arg13[%c0_58, %c0_59] : memref<4x1xf32, #tpu.memory_space<vmem>>, vector<4x1xf32>
    %117 = arith.addf %115, %116 : vector<4x1xf32>
    %cst_60 = arith.constant 0.000000e+00 : f32
    %118 = vector.broadcast %cst_60 : f32 to vector<4x1xf32>
    %119 = arith.maximumf %117, %118 : vector<4x1xf32>
    %c0_61 = arith.constant 0 : index
    %c0_62 = arith.constant 0 : index
    %120 = vector.load %arg14[%c0_61, %c0_62] : memref<24x4xf32, #tpu.memory_space<vmem>>, vector<24x4xf32>
    %cst_63 = arith.constant dense<0.000000e+00> : vector<24x1xf32>
    %121 = tpu.matmul %120, %119, %cst_63 {dimension_numbers = #tpu.dot_dimension_numbers<[1], [0], [0], [1], [0, 0, 1, 1], [], []>} : vector<24x4xf32>, vector<4x1xf32>, vector<24x1xf32> -> vector<24x1xf32>
    %c0_64 = arith.constant 0 : index
    %c0_65 = arith.constant 0 : index
    %122 = vector.load %arg15[%c0_64, %c0_65] : memref<24x1xf32, #tpu.memory_space<vmem>>, vector<24x1xf32>
    %123 = arith.mulf %121, %122 : vector<24x1xf32>
    %c0_66 = arith.constant 0 : index
    %c0_67 = arith.constant 0 : index
    %124 = vector.load %arg16[%c0_66, %c0_67] : memref<24x1xf32, #tpu.memory_space<vmem>>, vector<24x1xf32>
    %125 = arith.addf %123, %124 : vector<24x1xf32>
    %cst_68 = arith.constant 0.000000e+00 : f32
    %126 = vector.broadcast %cst_68 : f32 to vector<24x1xf32>
    %127 = arith.subf %126, %125 : vector<24x1xf32>
    %128 = math.exp %127 : vector<24x1xf32>
    %cst_69 = arith.constant 1.000000e+00 : f32
    %129 = vector.broadcast %cst_69 : f32 to vector<24x1xf32>
    %130 = arith.addf %129, %128 : vector<24x1xf32>
    %131 = tpu.reciprocal %130 {approx = true} : vector<24x1xf32> -> vector<24x1xf32>
    %c0_70 = arith.constant 0 : index
    %c0_71 = arith.constant 0 : index
    %132 = vector.load %arg18[%c0_70, %c0_71] : memref<1x128xf32, #tpu.memory_space<vmem>>, vector<1x128xf32>
    %cst_72 = arith.constant dense<0.000000e+00> : vector<24x128xf32>
    %133 = tpu.matmul %131, %132, %cst_72 {dimension_numbers = #tpu.dot_dimension_numbers<[1], [0], [0], [1], [0, 0, 1, 1], [], []>} : vector<24x1xf32>, vector<1x128xf32>, vector<24x128xf32> -> vector<24x128xf32>
    %134 = vector.extract_strided_slice %133 {offsets = [0, 0], sizes = [8, 128], strides = [1, 1]} : vector<24x128xf32> to vector<8x128xf32>
    %135 = arith.mulf %39, %134 : vector<8x128xf32>
    %136 = arith.addf %10, %135 : vector<8x128xf32>
    %137 = vector.extract_strided_slice %133 {offsets = [8, 0], sizes = [8, 128], strides = [1, 1]} : vector<24x128xf32> to vector<8x128xf32>
    %138 = arith.mulf %68, %137 : vector<8x128xf32>
    %139 = arith.addf %136, %138 : vector<8x128xf32>
    %140 = vector.extract_strided_slice %133 {offsets = [16, 0], sizes = [8, 128], strides = [1, 1]} : vector<24x128xf32> to vector<8x128xf32>
    %141 = arith.mulf %98, %140 : vector<8x128xf32>
    %142 = arith.addf %139, %141 : vector<8x128xf32>
    %c0_73 = arith.constant 0 : index
    %c0_74 = arith.constant 0 : index
    %143 = vector.load %arg19[%c0_73, %c0_74] : memref<8x128xf32, #tpu.memory_space<vmem>>, vector<8x128xf32>
    tpu.vector_store %arg19[%c0_73, %c0_74], %142 {strides = array<i32>} : memref<8x128xf32, #tpu.memory_space<vmem>>, vector<8x128xf32>,
    return
  }
  func.func @transform_0(%arg0: i32) -> (i32, i32) {
    %c0_i32 = arith.constant 0 : i32
    %c0_i32_0 = arith.constant 0 : i32
    return %c0_i32, %arg0 : i32, i32
  }
  func.func @transform_1(%arg0: i32) -> (i32, i32) {
    %c0_i32 = arith.constant 0 : i32
    %c0_i32_0 = arith.constant 0 : i32
    %c0_i32_1 = arith.constant 0 : i32
    return %c0_i32, %c0_i32_0 : i32, i32
  }
  func.func @transform_2(%arg0: i32) -> (i32, i32) {
    %c0_i32 = arith.constant 0 : i32
    %c0_i32_0 = arith.constant 0 : i32
    %c0_i32_1 = arith.constant 0 : i32
    return %c0_i32, %c0_i32_0 : i32, i32
  }
  func.func @transform_3(%arg0: i32) -> (i32, i32) {
    %c0_i32 = arith.constant 0 : i32
    %c0_i32_0 = arith.constant 0 : i32
    %c0_i32_1 = arith.constant 0 : i32
    return %c0_i32, %c0_i32_0 : i32, i32
  }
  func.func @transform_4(%arg0: i32) -> (i32, i32) {
    %c0_i32 = arith.constant 0 : i32
    %c0_i32_0 = arith.constant 0 : i32
    %c0_i32_1 = arith.constant 0 : i32
    return %c0_i32, %c0_i32_0 : i32, i32
  }
  func.func @transform_5(%arg0: i32) -> (i32, i32, i32) {
    %c0_i32 = arith.constant 0 : i32
    %c0_i32_0 = arith.constant 0 : i32
    %c0_i32_1 = arith.constant 0 : i32
    %c0_i32_2 = arith.constant 0 : i32
    return %c0_i32, %c0_i32_0, %c0_i32_1 : i32, i32, i32
  }
  func.func @transform_6(%arg0: i32) -> (i32, i32, i32) {
    %c0_i32 = arith.constant 0 : i32
    %c0_i32_0 = arith.constant 0 : i32
    %c0_i32_1 = arith.constant 0 : i32
    %c0_i32_2 = arith.constant 0 : i32
    return %c0_i32, %c0_i32_0, %c0_i32_1 : i32, i32, i32
  }
  func.func @transform_7(%arg0: i32) -> (i32, i32, i32) {
    %c0_i32 = arith.constant 0 : i32
    %c0_i32_0 = arith.constant 0 : i32
    %c0_i32_1 = arith.constant 0 : i32
    %c0_i32_2 = arith.constant 0 : i32
    return %c0_i32, %c0_i32_0, %c0_i32_1 : i32, i32, i32
  }
  func.func @transform_8(%arg0: i32) -> (i32, i32, i32) {
    %c0_i32 = arith.constant 0 : i32
    %c0_i32_0 = arith.constant 0 : i32
    %c0_i32_1 = arith.constant 0 : i32
    %c0_i32_2 = arith.constant 0 : i32
    return %c0_i32, %c0_i32_0, %c0_i32_1 : i32, i32, i32
  }
  func.func @transform_9(%arg0: i32) -> (i32, i32, i32) {
    %c0_i32 = arith.constant 0 : i32
    %c0_i32_0 = arith.constant 0 : i32
    %c0_i32_1 = arith.constant 0 : i32
    %c0_i32_2 = arith.constant 0 : i32
    return %c0_i32, %c0_i32_0, %c0_i32_1 : i32, i32, i32
  }
  func.func @transform_10(%arg0: i32) -> (i32, i32, i32) {
    %c0_i32 = arith.constant 0 : i32
    %c0_i32_0 = arith.constant 0 : i32
    %c0_i32_1 = arith.constant 0 : i32
    %c0_i32_2 = arith.constant 0 : i32
    return %c0_i32, %c0_i32_0, %c0_i32_1 : i32, i32, i32
  }
  func.func @transform_11(%arg0: i32) -> (i32, i32) {
    %c0_i32 = arith.constant 0 : i32
    %c0_i32_0 = arith.constant 0 : i32
    %c0_i32_1 = arith.constant 0 : i32
    return %c0_i32, %c0_i32_0 : i32, i32
  }
  func.func @transform_12(%arg0: i32) -> (i32, i32) {
    %c0_i32 = arith.constant 0 : i32
    %c0_i32_0 = arith.constant 0 : i32
    %c0_i32_1 = arith.constant 0 : i32
    return %c0_i32, %c0_i32_0 : i32, i32
  }
  func.func @transform_13(%arg0: i32) -> (i32, i32) {
    %c0_i32 = arith.constant 0 : i32
    %c0_i32_0 = arith.constant 0 : i32
    %c0_i32_1 = arith.constant 0 : i32
    return %c0_i32, %c0_i32_0 : i32, i32
  }
  func.func @transform_14(%arg0: i32) -> (i32, i32) {
    %c0_i32 = arith.constant 0 : i32
    %c0_i32_0 = arith.constant 0 : i32
    %c0_i32_1 = arith.constant 0 : i32
    return %c0_i32, %c0_i32_0 : i32, i32
  }
  func.func @transform_15(%arg0: i32) -> (i32, i32) {
    %c0_i32 = arith.constant 0 : i32
    %c0_i32_0 = arith.constant 0 : i32
    %c0_i32_1 = arith.constant 0 : i32
    return %c0_i32, %c0_i32_0 : i32, i32
  }
  func.func @transform_16(%arg0: i32) -> (i32, i32) {
    %c0_i32 = arith.constant 0 : i32
    %c0_i32_0 = arith.constant 0 : i32
    %c0_i32_1 = arith.constant 0 : i32
    return %c0_i32, %c0_i32_0 : i32, i32
  }
  func.func @transform_17(%arg0: i32) -> (i32, i32) {
    %c0_i32 = arith.constant 0 : i32
    %c0_i32_0 = arith.constant 0 : i32
    %c0_i32_1 = arith.constant 0 : i32
    return %c0_i32, %c0_i32_0 : i32, i32
  }
  func.func @transform_18(%arg0: i32) -> (i32, i32) {
    %c0_i32 = arith.constant 0 : i32
    %c0_i32_0 = arith.constant 0 : i32
    return %c0_i32, %arg0 : i32, i32
  }
}

</mosaic_0001>

<llo_original>
// kernel: tpu_custom_call.1
$region0: #{tpu_custom_call.1}
  #allocation0 [shape = 'u32[]', space=smem, size = 0x4, offset = 0x4, fixed_abs, tag = 'smem constant byte address 0x4 - core index']
  #allocation1 [shape = 'u32[144,128]{1,0:T(1,128)}', space=vmem, size = 0x12000, scoped, tag = 'internal scratch']
  #allocation2 [shape = 'bf16[16,384]{1,0:T(16,128)(2,1)}', space=vmem, size = 0x3000, scoped, tag = 'scratch operand']
  %s0 = inlined_call_operand.vmem [shape: bf16[16,256], index: 0, kind: input, shape index: {}]
  %s1 = inlined_call_operand.vmem [shape: bf16[24,16], index: 1, kind: input, shape index: {}]
  %s2 = inlined_call_operand.vmem [shape: f32[24,1], index: 2, kind: input, shape index: {}]
  %s3 = inlined_call_operand.vmem [shape: f32[1,128], index: 3, kind: input, shape index: {}]
  %s4 = inlined_call_operand.vmem [shape: bf16[24,16], index: 4, kind: input, shape index: {}]
  %s5 = inlined_call_operand.vmem [shape: bf16[3,8,16], index: 5, kind: input, shape index: {}]
  %s6 = inlined_call_operand.vmem [shape: bf16[3,8,16], index: 6, kind: input, shape index: {}]
  %s7 = inlined_call_operand.vmem [shape: f32[3,8,1], index: 7, kind: input, shape index: {}]
  %s8 = inlined_call_operand.vmem [shape: f32[3,8,1], index: 8, kind: input, shape index: {}]
  %s9 = inlined_call_operand.vmem [shape: f32[3,8,1], index: 9, kind: input, shape index: {}]
  %s10 = inlined_call_operand.vmem [shape: f32[3,4,8], index: 10, kind: input, shape index: {}]
  %s11 = inlined_call_operand.vmem [shape: f32[4,1], index: 11, kind: input, shape index: {}]
  %s12 = inlined_call_operand.vmem [shape: f32[4,1], index: 12, kind: input, shape index: {}]
  %s13 = inlined_call_operand.vmem [shape: f32[24,4], index: 13, kind: input, shape index: {}]
  %s14 = inlined_call_operand.vmem [shape: f32[24,1], index: 14, kind: input, shape index: {}]
  %s15 = inlined_call_operand.vmem [shape: f32[24,1], index: 15, kind: input, shape index: {}]
  %s16 = inlined_call_operand.vmem [shape: f32[128,1], index: 16, kind: input, shape index: {}]
  %s17 = inlined_call_operand.vmem [shape: f32[1,128], index: 17, kind: input, shape index: {}]
  %s18 = inlined_call_operand.hbm [shape: f32[8,256], index: 18, kind: output, shape index: {}]
  %s19 = sld [smem:[#allocation0]]
  $region146: #{tpu_custom_call.1} parent=0
    _
  %s21 = ssub.s32 1, %s19
  %s22 = scalar_select 0, %s21, %s19
  $region1: #{tpu_custom_call.1} parent=0
    #allocation3 [shape = 'u8[8192]{0}', space=vmem, size = 0x2000, scoped, tag = 'input window, operand 0']
    #allocation4 [shape = 'u8[8192]{0}', space=vmem, size = 0x2000, scoped, tag = 'output window, operand 0']
    #allocation5 [shape = 's32[2]{0}', space=sflag, size = 0x8, scoped, tag = 'scoped memory for tpu_custom_call.1']
    %23 = vsyncpa [#allocation5], 0
    %s24 = scalar_lea.sflag [#allocation5], 1
    %25 = vsyncpa %s24, 0
    loop: start=0, step=1, limit=4
    $region2: #{tpu_custom_call.1} parent=1 // loop_pre_header
      _
    $region3: #{tpu_custom_call.1} parent=1 // loop_header
      %s27 = sphi 0, %s31
      %p28 = scmp.ge.s32.totalorder %s27, 4
      %s37 = sphi 0, %s39
      %s40 = sphi 0, %s37
      %s41 = sphi 0, %s40
      %s57 = sphi 0, %s41
      %s61 = sphi 0, %s61
      %s63 = sphi 0, %s61
      %s64 = sphi 0, %s63
      %s78 = sphi 0, %s64
      %s82 = sphi 0, %s82
      %s84 = sphi 0, %s82
      %s85 = sphi 0, %s84
      %s99 = sphi 0, %s85
      %s103 = sphi 0, %s103
      %s105 = sphi 0, %s103
      %s106 = sphi 0, %s105
      %s120 = sphi 0, %s106
      %s124 = sphi 0, %s124
      %s126 = sphi 0, %s124
      %s127 = sphi 0, %s126
      %s141 = sphi 0, %s127
      %s145 = sphi 0, %s145
      %s147 = sphi 0, %s145
      %s148 = sphi 0, %s147
      %s162 = sphi 0, %s148
      %s166 = sphi 0, %s166
      %s168 = sphi 0, %s166
      %s169 = sphi 0, %s168
      %s183 = sphi 0, %s169
      %s187 = sphi 0, %s187
      %s189 = sphi 0, %s187
      %s190 = sphi 0, %s189
      %s204 = sphi 0, %s190
      %s208 = sphi 0, %s208
      %s210 = sphi 0, %s208
      %s211 = sphi 0, %s210
      %s225 = sphi 0, %s211
      %s229 = sphi 0, %s229
      %s231 = sphi 0, %s229
      %s232 = sphi 0, %s231
      %s246 = sphi 0, %s232
      %s250 = sphi 0, %s250
      %s252 = sphi 0, %s250
      %s253 = sphi 0, %s252
      %s267 = sphi 0, %s253
      %s271 = sphi 0, %s271
      %s273 = sphi 0, %s271
      %s274 = sphi 0, %s273
      %s288 = sphi 0, %s274
      %s292 = sphi 0, %s292
      %s294 = sphi 0, %s292
      %s295 = sphi 0, %s294
      %s309 = sphi 0, %s295
      %s313 = sphi 0, %s313
      %s315 = sphi 0, %s313
      %s316 = sphi 0, %s315
      %s330 = sphi 0, %s316
      %s334 = sphi 0, %s334
      %s336 = sphi 0, %s334
      %s337 = sphi 0, %s336
      %s351 = sphi 0, %s337
      %s355 = sphi 0, %s355
      %s357 = sphi 0, %s355
      %s358 = sphi 0, %s357
      %s372 = sphi 0, %s358
      %s376 = sphi 0, %s376
      %s378 = sphi 0, %s376
      %s379 = sphi 0, %s378
      %s393 = sphi 0, %s379
      %s397 = sphi 0, %s397
      %s399 = sphi 0, %s397
      %s400 = sphi 0, %s399
      %s414 = sphi 0, %s400
      %s420 = sphi 0, %s422
      %s423 = sphi 0, %s420
      %s424 = sphi 0, %s423
      %s440 = sphi 0, %s424
    $region4: #{tpu_custom_call.1} parent=1 // loop_header_branch
      %30 = sbr.rel (%p28) target = $region8
    $region5: #{tpu_custom_call.1} parent=1 // loop_body
      %s32 = ssub.s32 %s27, 1
      %s33 = ssub.s32 %s27, 2
      %s34 = sadd.s32 %s27, 1
      %s35 = ssub.s32 %s27, %s34
      %p36 = scmp.eq.s32.totalorder %s35, 0
      %s38 = sadd.s32 %s37, 1
      %s39 = scalar_select %p36, %s37, %s38
      %p42 = pneg %p36
      %p43 = scmp.eq.s32.totalorder %s27, 1
      %p44 = por %p42, %p43
      %p45 = scmp.ne.s32.totalorder %s37, %s40
      %p46 = scmp.eq.s32.totalorder %s27, 0
      %p47 = por %p45, %p46
      %p48 = scmp.ne.s32.totalorder %s37, %s40
      %p49 = scmp.eq.s32.totalorder %s32, 1
      %p50 = por %p48, %p49
      %p51 = scmp.ne.s32.totalorder %s40, %s41
      %p52 = scmp.eq.s32.totalorder %s32, 0
      %p53 = por %p51, %p52
      %p54 = scmp.ne.s32.totalorder %s40, %s41
      %p55 = scmp.eq.s32.totalorder %s33, 1
      %p56 = por %p54, %p55
      %p58 = scmp.ne.s32.totalorder %s41, %s57
      %p59 = scmp.eq.s32.totalorder %s33, 0
      %p60 = por %p58, %p59
      %s62 = sadd.s32 %s61, 1
      %p65 = scmp.eq.s32.totalorder %s27, 1
      %p66 = scmp.ne.s32.totalorder %s61, %s63
      %p67 = scmp.eq.s32.totalorder %s27, 0
      %p68 = por %p66, %p67
      %p69 = scmp.ne.s32.totalorder %s61, %s63
      %p70 = scmp.eq.s32.totalorder %s32, 1
      %p71 = por %p69, %p70
      %p72 = scmp.ne.s32.totalorder %s63, %s64
      %p73 = scmp.eq.s32.totalorder %s32, 0
      %p74 = por %p72, %p73
      %p75 = scmp.ne.s32.totalorder %s63, %s64
      %p76 = scmp.eq.s32.totalorder %s33, 1
      %p77 = por %p75, %p76
      %p79 = scmp.ne.s32.totalorder %s64, %s78
      %p80 = scmp.eq.s32.totalorder %s33, 0
      %p81 = por %p79, %p80
      %s83 = sadd.s32 %s82, 1
      %p86 = scmp.eq.s32.totalorder %s27, 1
      %p87 = scmp.ne.s32.totalorder %s82, %s84
      %p88 = scmp.eq.s32.totalorder %s27, 0
      %p89 = por %p87, %p88
      %p90 = scmp.ne.s32.totalorder %s82, %s84
      %p91 = scmp.eq.s32.totalorder %s32, 1
      %p92 = por %p90, %p91
      %p93 = scmp.ne.s32.totalorder %s84, %s85
      %p94 = scmp.eq.s32.totalorder %s32, 0
      %p95 = por %p93, %p94
      %p96 = scmp.ne.s32.totalorder %s84, %s85
      %p97 = scmp.eq.s32.totalorder %s33, 1
      %p98 = por %p96, %p97
      %p100 = scmp.ne.s32.totalorder %s85, %s99
      %p101 = scmp.eq.s32.totalorder %s33, 0
      %p102 = por %p100, %p101
      %s104 = sadd.s32 %s103, 1
      %p107 = scmp.eq.s32.totalorder %s27, 1
      %p108 = scmp.ne.s32.totalorder %s103, %s105
      %p109 = scmp.eq.s32.totalorder %s27, 0
      %p110 = por %p108, %p109
      %p111 = scmp.ne.s32.totalorder %s103, %s105
      %p112 = scmp.eq.s32.totalorder %s32, 1
      %p113 = por %p111, %p112
      %p114 = scmp.ne.s32.totalorder %s105, %s106
      %p115 = scmp.eq.s32.totalorder %s32, 0
      %p116 = por %p114, %p115
      %p117 = scmp.ne.s32.totalorder %s105, %s106
      %p118 = scmp.eq.s32.totalorder %s33, 1
      %p119 = por %p117, %p118
      %p121 = scmp.ne.s32.totalorder %s106, %s120
      %p122 = scmp.eq.s32.totalorder %s33, 0
      %p123 = por %p121, %p122
      %s125 = sadd.s32 %s124, 1
      %p128 = scmp.eq.s32.totalorder %s27, 1
      %p129 = scmp.ne.s32.totalorder %s124, %s126
      %p130 = scmp.eq.s32.totalorder %s27, 0
      %p131 = por %p129, %p130
      %p132 = scmp.ne.s32.totalorder %s124, %s126
      %p133 = scmp.eq.s32.totalorder %s32, 1
      %p134 = por %p132, %p133
      %p135 = scmp.ne.s32.totalorder %s126, %s127
      %p136 = scmp.eq.s32.totalorder %s32, 0
      %p137 = por %p135, %p136
      %p138 = scmp.ne.s32.totalorder %s126, %s127
      %p139 = scmp.eq.s32.totalorder %s33, 1
      %p140 = por %p138, %p139
      %p142 = scmp.ne.s32.totalorder %s127, %s141
      %p143 = scmp.eq.s32.totalorder %s33, 0
      %p144 = por %p142, %p143
      %s146 = sadd.s32 %s145, 1
      %p149 = scmp.eq.s32.totalorder %s27, 1
      %p150 = scmp.ne.s32.totalorder %s145, %s147
      %p151 = scmp.eq.s32.totalorder %s27, 0
      %p152 = por %p150, %p151
      %p153 = scmp.ne.s32.totalorder %s145, %s147
      %p154 = scmp.eq.s32.totalorder %s32, 1
      %p155 = por %p153, %p154
      %p156 = scmp.ne.s32.totalorder %s147, %s148
      %p157 = scmp.eq.s32.totalorder %s32, 0
      %p158 = por %p156, %p157
      %p159 = scmp.ne.s32.totalorder %s147, %s148
      %p160 = scmp.eq.s32.totalorder %s33, 1
      %p161 = por %p159, %p160
      %p163 = scmp.ne.s32.totalorder %s148, %s162
      %p164 = scmp.eq.s32.totalorder %s33, 0
      %p165 = por %p163, %p164
      %s167 = sadd.s32 %s166, 1
      %p170 = scmp.eq.s32.totalorder %s27, 1
      %p171 = scmp.ne.s32.totalorder %s166, %s168
      %p172 = scmp.eq.s32.totalorder %s27, 0
      %p173 = por %p171, %p172
      %p174 = scmp.ne.s32.totalorder %s166, %s168
      %p175 = scmp.eq.s32.totalorder %s32, 1
      %p176 = por %p174, %p175
      %p177 = scmp.ne.s32.totalorder %s168, %s169
      %p178 = scmp.eq.s32.totalorder %s32, 0
      %p179 = por %p177, %p178
      %p180 = scmp.ne.s32.totalorder %s168, %s169
      %p181 = scmp.eq.s32.totalorder %s33, 1
      %p182 = por %p180, %p181
      %p184 = scmp.ne.s32.totalorder %s169, %s183
      %p185 = scmp.eq.s32.totalorder %s33, 0
      %p186 = por %p184, %p185
      %s188 = sadd.s32 %s187, 1
      %p191 = scmp.eq.s32.totalorder %s27, 1
      %p192 = scmp.ne.s32.totalorder %s187, %s189
      %p193 = scmp.eq.s32.totalorder %s27, 0
      %p194 = por %p192, %p193
      %p195 = scmp.ne.s32.totalorder %s187, %s189
      %p196 = scmp.eq.s32.totalorder %s32, 1
      %p197 = por %p195, %p196
      %p198 = scmp.ne.s32.totalorder %s189, %s190
      %p199 = scmp.eq.s32.totalorder %s32, 0
      %p200 = por %p198, %p199
      %p201 = scmp.ne.s32.totalorder %s189, %s190
      %p202 = scmp.eq.s32.totalorder %s33, 1
      %p203 = por %p201, %p202
      %p205 = scmp.ne.s32.totalorder %s190, %s204
      %p206 = scmp.eq.s32.totalorder %s33, 0
      %p207 = por %p205, %p206
      %s209 = sadd.s32 %s208, 1
      %p212 = scmp.eq.s32.totalorder %s27, 1
      %p213 = scmp.ne.s32.totalorder %s208, %s210
      %p214 = scmp.eq.s32.totalorder %s27, 0
      %p215 = por %p213, %p214
      %p216 = scmp.ne.s32.totalorder %s208, %s210
      %p217 = scmp.eq.s32.totalorder %s32, 1
      %p218 = por %p216, %p217
      %p219 = scmp.ne.s32.totalorder %s210, %s211
      %p220 = scmp.eq.s32.totalorder %s32, 0
      %p221 = por %p219, %p220
      %p222 = scmp.ne.s32.totalorder %s210, %s211
      %p223 = scmp.eq.s32.totalorder %s33, 1
      %p224 = por %p222, %p223
      %p226 = scmp.ne.s32.totalorder %s211, %s225
      %p227 = scmp.eq.s32.totalorder %s33, 0
      %p228 = por %p226, %p227
      %s230 = sadd.s32 %s229, 1
      %p233 = scmp.eq.s32.totalorder %s27, 1
      %p234 = scmp.ne.s32.totalorder %s229, %s231
      %p235 = scmp.eq.s32.totalorder %s27, 0
      %p236 = por %p234, %p235
      %p237 = scmp.ne.s32.totalorder %s229, %s231
      %p238 = scmp.eq.s32.totalorder %s32, 1
      %p239 = por %p237, %p238
      %p240 = scmp.ne.s32.totalorder %s231, %s232
      %p241 = scmp.eq.s32.totalorder %s32, 0
      %p242 = por %p240, %p241
      %p243 = scmp.ne.s32.totalorder %s231, %s232
      %p244 = scmp.eq.s32.totalorder %s33, 1
      %p245 = por %p243, %p244
      %p247 = scmp.ne.s32.totalorder %s232, %s246
      %p248 = scmp.eq.s32.totalorder %s33, 0
      %p249 = por %p247, %p248
      %s251 = sadd.s32 %s250, 1
      %p254 = scmp.eq.s32.totalorder %s27, 1
      %p255 = scmp.ne.s32.totalorder %s250, %s252
      %p256 = scmp.eq.s32.totalorder %s27, 0
      %p257 = por %p255, %p256
      %p258 = scmp.ne.s32.totalorder %s250, %s252
      %p259 = scmp.eq.s32.totalorder %s32, 1
      %p260 = por %p258, %p259
      %p261 = scmp.ne.s32.totalorder %s252, %s253
      %p262 = scmp.eq.s32.totalorder %s32, 0
      %p263 = por %p261, %p262
      %p264 = scmp.ne.s32.totalorder %s252, %s253
      %p265 = scmp.eq.s32.totalorder %s33, 1
      %p266 = por %p264, %p265
      %p268 = scmp.ne.s32.totalorder %s253, %s267
      %p269 = scmp.eq.s32.totalorder %s33, 0
      %p270 = por %p268, %p269
      %s272 = sadd.s32 %s271, 1
      %p275 = scmp.eq.s32.totalorder %s27, 1
      %p276 = scmp.ne.s32.totalorder %s271, %s273
      %p277 = scmp.eq.s32.totalorder %s27, 0
      %p278 = por %p276, %p277
      %p279 = scmp.ne.s32.totalorder %s271, %s273
      %p280 = scmp.eq.s32.totalorder %s32, 1
      %p281 = por %p279, %p280
      %p282 = scmp.ne.s32.totalorder %s273, %s274
      %p283 = scmp.eq.s32.totalorder %s32, 0
      %p284 = por %p282, %p283
      %p285 = scmp.ne.s32.totalorder %s273, %s274
      %p286 = scmp.eq.s32.totalorder %s33, 1
      %p287 = por %p285, %p286
      %p289 = scmp.ne.s32.totalorder %s274, %s288
      %p290 = scmp.eq.s32.totalorder %s33, 0
      %p291 = por %p289, %p290
      %s293 = sadd.s32 %s292, 1
      %p296 = scmp.eq.s32.totalorder %s27, 1
      %p297 = scmp.ne.s32.totalorder %s292, %s294
      %p298 = scmp.eq.s32.totalorder %s27, 0
      %p299 = por %p297, %p298
      %p300 = scmp.ne.s32.totalorder %s292, %s294
      %p301 = scmp.eq.s32.totalorder %s32, 1
      %p302 = por %p300, %p301
      %p303 = scmp.ne.s32.totalorder %s294, %s295
      %p304 = scmp.eq.s32.totalorder %s32, 0
      %p305 = por %p303, %p304
      %p306 = scmp.ne.s32.totalorder %s294, %s295
      %p307 = scmp.eq.s32.totalorder %s33, 1
      %p308 = por %p306, %p307
      %p310 = scmp.ne.s32.totalorder %s295, %s309
      %p311 = scmp.eq.s32.totalorder %s33, 0
      %p312 = por %p310, %p311
      %s314 = sadd.s32 %s313, 1
      %p317 = scmp.eq.s32.totalorder %s27, 1
      %p318 = scmp.ne.s32.totalorder %s313, %s315
      %p319 = scmp.eq.s32.totalorder %s27, 0
      %p320 = por %p318, %p319
      %p321 = scmp.ne.s32.totalorder %s313, %s315
      %p322 = scmp.eq.s32.totalorder %s32, 1
      %p323 = por %p321, %p322
      %p324 = scmp.ne.s32.totalorder %s315, %s316
      %p325 = scmp.eq.s32.totalorder %s32, 0
      %p326 = por %p324, %p325
      %p327 = scmp.ne.s32.totalorder %s315, %s316
      %p328 = scmp.eq.s32.totalorder %s33, 1
      %p329 = por %p327, %p328
      %p331 = scmp.ne.s32.totalorder %s316, %s330
      %p332 = scmp.eq.s32.totalorder %s33, 0
      %p333 = por %p331, %p332
      %s335 = sadd.s32 %s334, 1
      %p338 = scmp.eq.s32.totalorder %s27, 1
      %p339 = scmp.ne.s32.totalorder %s334, %s336
      %p340 = scmp.eq.s32.totalorder %s27, 0
      %p341 = por %p339, %p340
      %p342 = scmp.ne.s32.totalorder %s334, %s336
      %p343 = scmp.eq.s32.totalorder %s32, 1
      %p344 = por %p342, %p343
      %p345 = scmp.ne.s32.totalorder %s336, %s337
      %p346 = scmp.eq.s32.totalorder %s32, 0
      %p347 = por %p345, %p346
      %p348 = scmp.ne.s32.totalorder %s336, %s337
      %p349 = scmp.eq.s32.totalorder %s33, 1
      %p350 = por %p348, %p349
      %p352 = scmp.ne.s32.totalorder %s337, %s351
      %p353 = scmp.eq.s32.totalorder %s33, 0
      %p354 = por %p352, %p353
      %s356 = sadd.s32 %s355, 1
      %p359 = scmp.eq.s32.totalorder %s27, 1
      %p360 = scmp.ne.s32.totalorder %s355, %s357
      %p361 = scmp.eq.s32.totalorder %s27, 0
      %p362 = por %p360, %p361
      %p363 = scmp.ne.s32.totalorder %s355, %s357
      %p364 = scmp.eq.s32.totalorder %s32, 1
      %p365 = por %p363, %p364
      %p366 = scmp.ne.s32.totalorder %s357, %s358
      %p367 = scmp.eq.s32.totalorder %s32, 0
      %p368 = por %p366, %p367
      %p369 = scmp.ne.s32.totalorder %s357, %s358
      %p370 = scmp.eq.s32.totalorder %s33, 1
      %p371 = por %p369, %p370
      %p373 = scmp.ne.s32.totalorder %s358, %s372
      %p374 = scmp.eq.s32.totalorder %s33, 0
      %p375 = por %p373, %p374
      %s377 = sadd.s32 %s376, 1
      %p380 = scmp.eq.s32.totalorder %s27, 1
      %p381 = scmp.ne.s32.totalorder %s376, %s378
      %p382 = scmp.eq.s32.totalorder %s27, 0
      %p383 = por %p381, %p382
      %p384 = scmp.ne.s32.totalorder %s376, %s378
      %p385 = scmp.eq.s32.totalorder %s32, 1
      %p386 = por %p384, %p385
      %p387 = scmp.ne.s32.totalorder %s378, %s379
      %p388 = scmp.eq.s32.totalorder %s32, 0
      %p389 = por %p387, %p388
      %p390 = scmp.ne.s32.totalorder %s378, %s379
      %p391 = scmp.eq.s32.totalorder %s33, 1
      %p392 = por %p390, %p391
      %p394 = scmp.ne.s32.totalorder %s379, %s393
      %p395 = scmp.eq.s32.totalorder %s33, 0
      %p396 = por %p394, %p395
      %s398 = sadd.s32 %s397, 1
      %p401 = scmp.eq.s32.totalorder %s27, 1
      %p402 = scmp.ne.s32.totalorder %s397, %s399
      %p403 = scmp.eq.s32.totalorder %s27, 0
      %p404 = por %p402, %p403
      %p405 = scmp.ne.s32.totalorder %s397, %s399
      %p406 = scmp.eq.s32.totalorder %s32, 1
      %p407 = por %p405, %p406
      %p408 = scmp.ne.s32.totalorder %s399, %s400
      %p409 = scmp.eq.s32.totalorder %s32, 0
      %p410 = por %p408, %p409
      %p411 = scmp.ne.s32.totalorder %s399, %s400
      %p412 = scmp.eq.s32.totalorder %s33, 1
      %p413 = por %p411, %p412
      %p415 = scmp.ne.s32.totalorder %s400, %s414
      %p416 = scmp.eq.s32.totalorder %s33, 0
      %p417 = por %p415, %p416
      %s418 = ssub.s32 %s27, %s34
      %p419 = scmp.eq.s32.totalorder %s418, 0
      %s421 = sadd.s32 %s420, 1
      %s422 = scalar_select %p419, %s420, %s421
      %p425 = pneg %p419
      %p426 = scmp.eq.s32.totalorder %s27, 1
      %p427 = por %p425, %p426
      %p428 = scmp.ne.s32.totalorder %s420, %s423
      %p429 = scmp.eq.s32.totalorder %s27, 0
      %p430 = por %p428, %p429
      %p431 = scmp.ne.s32.totalorder %s420, %s423
      %p432 = scmp.eq.s32.totalorder %s32, 1
      %p433 = por %p431, %p432
      %p434 = scmp.ne.s32.totalorder %s423, %s424
      %p435 = scmp.eq.s32.totalorder %s32, 0
      %p436 = por %p434, %p435
      %p437 = scmp.ne.s32.totalorder %s423, %s424
      %p438 = scmp.eq.s32.totalorder %s33, 1
      %p439 = por %p437, %p438
      %p441 = scmp.ne.s32.totalorder %s424, %s440
      %p442 = scmp.eq.s32.totalorder %s33, 0
      %p443 = por %p441, %p442
      %p444 = scmp.le.s32.totalorder 1, %s27
      %p445 = scmp.lt.s32.totalorder %s27, 3
      %p446 = pnand %p444, %p445
      %p447 = pneg %p446
      // Predicated region
      $region9: #{tpu_custom_call.1} parent=5 // pred_check
        _
      $region10: #{tpu_custom_call.1} parent=5 // pred_check_branch
        %449 = sbr.rel (%p446) target = $region12
      $region11: #{tpu_custom_call.1} parent=5 // pred_region
        %s450 = ssub.s32 %s27, 1
        // Predicated region
        $region13: #{tpu_custom_call.1} parent=11 // pred_check
          %p451 = pneg %p74
        $region14: #{tpu_custom_call.1} parent=11 // pred_check_branch
          %453 = sbr.rel (%p451) target = $region16
        $region15: #{tpu_custom_call.1} parent=11 // pred_region
          _
        $region16: #{tpu_custom_call.1} parent=11 // pred_fallthru
          _
        // Predicated region
        $region17: #{tpu_custom_call.1} parent=11 // pred_check
          %p454 = pneg %p95
        $region18: #{tpu_custom_call.1} parent=11 // pred_check_branch
          %456 = sbr.rel (%p454) target = $region20
        $region19: #{tpu_custom_call.1} parent=11 // pred_region
          _
        $region20: #{tpu_custom_call.1} parent=11 // pred_fallthru
          _
        // Predicated region
        $region21: #{tpu_custom_call.1} parent=11 // pred_check
          %p457 = pneg %p116
        $region22: #{tpu_custom_call.1} parent=11 // pred_check_branch
          %459 = sbr.rel (%p457) target = $region24
        $region23: #{tpu_custom_call.1} parent=11 // pred_region
          _
        $region24: #{tpu_custom_call.1} parent=11 // pred_fallthru
          _
        // Predicated region
        $region25: #{tpu_custom_call.1} parent=11 // pred_check
          %p460 = pneg %p137
        $region26: #{tpu_custom_call.1} parent=11 // pred_check_branch
          %462 = sbr.rel (%p460) target = $region28
        $region27: #{tpu_custom_call.1} parent=11 // pred_region
          _
        $region28: #{tpu_custom_call.1} parent=11 // pred_fallthru
          _
        // Predicated region
        $region29: #{tpu_custom_call.1} parent=11 // pred_check
          %p463 = pneg %p158
        $region30: #{tpu_custom_call.1} parent=11 // pred_check_branch
          %465 = sbr.rel (%p463) target = $region32
        $region31: #{tpu_custom_call.1} parent=11 // pred_region
          _
        $region32: #{tpu_custom_call.1} parent=11 // pred_fallthru
          _
        // Predicated region
        $region33: #{tpu_custom_call.1} parent=11 // pred_check
          %p466 = pneg %p179
        $region34: #{tpu_custom_call.1} parent=11 // pred_check_branch
          %468 = sbr.rel (%p466) target = $region36
        $region35: #{tpu_custom_call.1} parent=11 // pred_region
          _
        $region36: #{tpu_custom_call.1} parent=11 // pred_fallthru
          _
        // Predicated region
        $region37: #{tpu_custom_call.1} parent=11 // pred_check
          %p469 = pneg %p200
        $region38: #{tpu_custom_call.1} parent=11 // pred_check_branch
          %471 = sbr.rel (%p469) target = $region40
        $region39: #{tpu_custom_call.1} parent=11 // pred_region
          _
        $region40: #{tpu_custom_call.1} parent=11 // pred_fallthru
          _
        // Predicated region
        $region41: #{tpu_custom_call.1} parent=11 // pred_check
          %p472 = pneg %p221
        $region42: #{tpu_custom_call.1} parent=11 // pred_check_branch
          %474 = sbr.rel (%p472) target = $region44
        $region43: #{tpu_custom_call.1} parent=11 // pred_region
          _
        $region44: #{tpu_custom_call.1} parent=11 // pred_fallthru
          _
        // Predicated region
        $region45: #{tpu_custom_call.1} parent=11 // pred_check
          %p475 = pneg %p242
        $region46: #{tpu_custom_call.1} parent=11 // pred_check_branch
          %477 = sbr.rel (%p475) target = $region48
        $region47: #{tpu_custom_call.1} parent=11 // pred_region
          _
        $region48: #{tpu_custom_call.1} parent=11 // pred_fallthru
          _
        // Predicated region
        $region49: #{tpu_custom_call.1} parent=11 // pred_check
          %p478 = pneg %p263
        $region50: #{tpu_custom_call.1} parent=11 // pred_check_branch
          %480 = sbr.rel (%p478) target = $region52
        $region51: #{tpu_custom_call.1} parent=11 // pred_region
          _
        $region52: #{tpu_custom_call.1} parent=11 // pred_fallthru
          _
        // Predicated region
        $region53: #{tpu_custom_call.1} parent=11 // pred_check
          %p481 = pneg %p284
        $region54: #{tpu_custom_call.1} parent=11 // pred_check_branch
          %483 = sbr.rel (%p481) target = $region56
        $region55: #{tpu_custom_call.1} parent=11 // pred_region
          _
        $region56: #{tpu_custom_call.1} parent=11 // pred_fallthru
          _
        // Predicated region
        $region57: #{tpu_custom_call.1} parent=11 // pred_check
          %p484 = pneg %p305
        $region58: #{tpu_custom_call.1} parent=11 // pred_check_branch
          %486 = sbr.rel (%p484) target = $region60
        $region59: #{tpu_custom_call.1} parent=11 // pred_region
          _
        $region60: #{tpu_custom_call.1} parent=11 // pred_fallthru
          _
        // Predicated region
        $region61: #{tpu_custom_call.1} parent=11 // pred_check
          %p487 = pneg %p326
        $region62: #{tpu_custom_call.1} parent=11 // pred_check_branch
          %489 = sbr.rel (%p487) target = $region64
        $region63: #{tpu_custom_call.1} parent=11 // pred_region
          _
        $region64: #{tpu_custom_call.1} parent=11 // pred_fallthru
          _
        // Predicated region
        $region65: #{tpu_custom_call.1} parent=11 // pred_check
          %p490 = pneg %p347
        $region66: #{tpu_custom_call.1} parent=11 // pred_check_branch
          %492 = sbr.rel (%p490) target = $region68
        $region67: #{tpu_custom_call.1} parent=11 // pred_region
          _
        $region68: #{tpu_custom_call.1} parent=11 // pred_fallthru
          _
        // Predicated region
        $region69: #{tpu_custom_call.1} parent=11 // pred_check
          %p493 = pneg %p368
        $region70: #{tpu_custom_call.1} parent=11 // pred_check_branch
          %495 = sbr.rel (%p493) target = $region72
        $region71: #{tpu_custom_call.1} parent=11 // pred_region
          _
        $region72: #{tpu_custom_call.1} parent=11 // pred_fallthru
          _
        // Predicated region
        $region73: #{tpu_custom_call.1} parent=11 // pred_check
          %p496 = pneg %p389
        $region74: #{tpu_custom_call.1} parent=11 // pred_check_branch
          %498 = sbr.rel (%p496) target = $region76
        $region75: #{tpu_custom_call.1} parent=11 // pred_region
          _
        $region76: #{tpu_custom_call.1} parent=11 // pred_fallthru
          _
        // Predicated region
        $region77: #{tpu_custom_call.1} parent=11 // pred_check
          %p499 = pneg %p410
        $region78: #{tpu_custom_call.1} parent=11 // pred_check_branch
          %501 = sbr.rel (%p499) target = $region80
        $region79: #{tpu_custom_call.1} parent=11 // pred_region
          _
        $region80: #{tpu_custom_call.1} parent=11 // pred_fallthru
          _
      $region12: #{tpu_custom_call.1} parent=5 // pred_fallthru
        _
      %p502 = scmp.lt.s32.totalorder %s27, 2
      // Predicated region
      $region81: #{tpu_custom_call.1} parent=5 // pred_check
        %p503 = pneg %p502
      $region82: #{tpu_custom_call.1} parent=5 // pred_check_branch
        %505 = sbr.rel (%p503) target = $region84
      $region83: #{tpu_custom_call.1} parent=5 // pred_region
        // Predicated region
        $region85: #{tpu_custom_call.1} parent=83 // pred_check
          %p506 = pneg %p47
        $region86: #{tpu_custom_call.1} parent=83 // pred_check_branch
          %508 = sbr.rel (%p506) target = $region88
        $region87: #{tpu_custom_call.1} parent=83 // pred_region
          %s509 = sand.u32 %s37, 1
          %s510 = sand.u32 %s37, 1
          %s511 = smul.addr %s510, 8
          %s512 = scalar_lea.vmem [#allocation3], %s511
          %s513 = smul.addr %s27, 4
          %s514 = scalar_lea.vmem %s0, %s513
          // Predicated region
          $region89: #{tpu_custom_call.1} parent=87 // pred_check
            _
          $region90: #{tpu_custom_call.1} parent=87 // pred_check_branch
            %516 = sbr.rel (0) target = $region92
          $region91: #{tpu_custom_call.1} parent=87 // pred_region
            // Predicated region
            $region93: #{tpu_custom_call.1} parent=91 // pred_check
              _
            $region94: #{tpu_custom_call.1} parent=91 // pred_check_branch
              %518 = sbr.rel target = $region96
            $region95: #{tpu_custom_call.1} parent=91 // pred_region
              // Predicated region
              $region108: #{tpu_custom_call.1} parent=95 // pred_check
                _
              $region109: #{tpu_custom_call.1} parent=95 // pred_check_branch
                %535 = sbr.rel (0) target = $region111
              $region110: #{tpu_custom_call.1} parent=95 // pred_region
                loop: start=0, step=1, limit=1
                $region112: #{tpu_custom_call.1} parent=110 // loop_pre_header
                  _
                $region113: #{tpu_custom_call.1} parent=110 // loop_header
                  %s537 = sphi 0, %s541
                  %p538 = scmp.ge.s32.totalorder %s537, 1
                  %s542 = sphi %s514, %s514
                  %s543 = sphi %s512, %s512
                $region114: #{tpu_custom_call.1} parent=110 // loop_header_branch
                  %540 = sbr.rel (%p538) target = $region118
                $region115: #{tpu_custom_call.1} parent=110 // loop_body
                  _
                $region116: #{tpu_custom_call.1} parent=110 // loop_footer
                  %s541 = sadd.s32 1, %s537
                $region117: #{tpu_custom_call.1} parent=110 // loop_footer_branch
                  %536 = sbr.rel target = $region113
                $region118: #{tpu_custom_call.1} parent=110 // loop_exit
                  _
                loop: start=0, step=1, limit=1
                $region119: #{tpu_custom_call.1} parent=110 // loop_pre_header
                  _
                $region120: #{tpu_custom_call.1} parent=110 // loop_header
                  %s546 = sphi 0, %s550
                  %p547 = scmp.ge.s32.totalorder %s546, 1
                  %s551 = sphi %s514, %s514
                  %s552 = sphi %s512, %s512
                $region121: #{tpu_custom_call.1} parent=110 // loop_header_branch
                  %549 = sbr.rel (%p547) target = $region125
                $region122: #{tpu_custom_call.1} parent=110 // loop_body
                  %v553 = vld [vmem:[%s551] sm:$0xf]
                  %554 = vst [vmem:[%s552] sm:$0xf] %v553
                  %v555 = vld [vmem:[%s551 + $0x8] sm:$0xf]
                  %556 = vst [vmem:[%s552 + $0x4] sm:$0xf] %v555
                $region123: #{tpu_custom_call.1} parent=110 // loop_footer
                  %s550 = sadd.s32 1, %s546
                $region124: #{tpu_custom_call.1} parent=110 // loop_footer_branch
                  %545 = sbr.rel target = $region120
                $region125: #{tpu_custom_call.1} parent=110 // loop_exit
                  _
              $region111: #{tpu_custom_call.1} parent=95 // pred_fallthru
                _
            $region96: #{tpu_custom_call.1} parent=91 // pred_fallthru
              _
            // Predicated region
            $region97: #{tpu_custom_call.1} parent=91 // pred_check
              _
            $region98: #{tpu_custom_call.1} parent=91 // pred_check_branch
              %520 = sbr.rel (0) target = $region100
            $region99: #{tpu_custom_call.1} parent=91 // pred_region
              loop: start=0, step=1, limit=1
              $region101: #{tpu_custom_call.1} parent=99 // loop_pre_header
                _
              $region102: #{tpu_custom_call.1} parent=99 // loop_header
                %s523 = sphi 0, %s527
                %p524 = scmp.ge.s32.totalorder %s523, 1
                %s528 = sphi %s514, %s514
                %s529 = sphi %s512, %s512
              $region103: #{tpu_custom_call.1} parent=99 // loop_header_branch
                %526 = sbr.rel (%p524) target = $region107
              $region104: #{tpu_custom_call.1} parent=99 // loop_body
                %v530 = vld [vmem:[%s528] sm:$0xf]
                %531 = vst [vmem:[%s529] sm:$0xf] %v530
                %v532 = vld [vmem:[%s528 + $0x8] sm:$0xf]
                %533 = vst [vmem:[%s529 + $0x4] sm:$0xf] %v532
              $region105: #{tpu_custom_call.1} parent=99 // loop_footer
                %s527 = sadd.s32 1, %s523
              $region106: #{tpu_custom_call.1} parent=99 // loop_footer_branch
                %522 = sbr.rel target = $region102
              $region107: #{tpu_custom_call.1} parent=99 // loop_exit
                _
            $region100: #{tpu_custom_call.1} parent=91 // pred_fallthru
              _
          $region92: #{tpu_custom_call.1} parent=87 // pred_fallthru
            _
          %557 = vnop
        $region88: #{tpu_custom_call.1} parent=83 // pred_fallthru
          _
      $region84: #{tpu_custom_call.1} parent=5 // pred_fallthru
        _
      %p558 = scmp.le.s32.totalorder 1, %s27
      %p559 = scmp.lt.s32.totalorder %s27, 3
      %p560 = pnand %p558, %p559
      %p561 = pneg %p560
      // Predicated region
      $region126: #{tpu_custom_call.1} parent=5 // pred_check
        _
      $region127: #{tpu_custom_call.1} parent=5 // pred_check_branch
        %563 = sbr.rel (%p560) target = $region129
      $region128: #{tpu_custom_call.1} parent=5 // pred_region
        %s564 = ssub.s32 %s27, 1
        %s565 = sand.u32 %s40, 1
        %s566 = sand.u32 %s40, 1
        %s567 = smul.addr %s566, 8
        %s568 = scalar_lea.vmem [#allocation3], %s567
        // Predicated region
        $region130: #{tpu_custom_call.1} parent=128 // pred_check
          %p569 = pneg %p53
        $region131: #{tpu_custom_call.1} parent=128 // pred_check_branch
          %571 = sbr.rel (%p569) target = $region133
        $region132: #{tpu_custom_call.1} parent=128 // pred_region
          _
        $region133: #{tpu_custom_call.1} parent=128 // pred_fallthru
          _
        %s572 = sand.u32 %s40, 1
        %s573 = sand.u32 %s40, 1
        %s574 = smul.addr %s573, 8
        %s575 = scalar_lea.vmem [#allocation3], %s574
        %p576 = pneg %p53
        %p577 = pneg %p50
        %p578 = pneg %p74
        %p579 = pneg %p71
        %p580 = pneg %p95
        %p581 = pneg %p92
        %p582 = pneg %p116
        %p583 = pneg %p113
        %p584 = pneg %p137
        %p585 = pneg %p134
        %p586 = pneg %p158
        %p587 = pneg %p155
        %p588 = pneg %p179
        %p589 = pneg %p176
        %p590 = pneg %p200
        %p591 = pneg %p197
        %p592 = pneg %p221
        %p593 = pneg %p218
        %p594 = pneg %p242
        %p595 = pneg %p239
        %p596 = pneg %p263
        %p597 = pneg %p260
        %p598 = pneg %p284
        %p599 = pneg %p281
        %p600 = pneg %p305
        %p601 = pneg %p302
        %p602 = pneg %p326
        %p603 = pneg %p323
        %p604 = pneg %p347
        %p605 = pneg %p344
        %p606 = pneg %p368
        %p607 = pneg %p365
        %p608 = pneg %p389
        %p609 = pneg %p386
        %p610 = pneg %p410
        %p611 = pneg %p407
        %p612 = pneg %p436
        %p613 = pneg %p433
        %s614 = sand.u32 %s423, 1
        %s615 = scalar_lea.sflag [#allocation5], %s614
        %s616 = sand.u32 %s423, 1
        %s617 = smul.addr %s616, 8
        %s618 = scalar_lea.vmem [#allocation4], %s617
        %v620 = vld [vmem:[%s1] sm:$0xf]
        %v621 = vld [vmem:[%s1 + $0x4] sm:$0xf]
        %v622 = vld [vmem:[%s1 + $0x8] sm:$0xf]
        %v623 = vld [vmem:[%s568] sm:$0xf]
        %v624 = vld [vmem:[%s568 + $0x4] sm:$0xf]
        %v625 = vld [vmem:[%s2] sm:$0xff]
        %v626 = vld [vmem:[%s2 + $0x8] sm:$0xff]
        %v627 = vld [vmem:[%s2 + $0x10] sm:$0xff]
        %629 = vset.pattern.permute.xlu0 0
        %630 = vperm.xlu0 %629, %v625
        %v631 = vpop.permute.xlu0 %630
        %634 = vset.pattern.permute.xlu0 0
        %635 = vperm.xlu0 %634, %v626
        %v636 = vpop.permute.xlu0 %635
        %639 = vset.pattern.permute.xlu0 0
        %640 = vperm.xlu0 %639, %v627
        %v641 = vpop.permute.xlu0 %640
        %v646 = vunpack.c.l.b16 %v620
        %v647 = vunpack.c.l.b16 %v621
        %v648 = vunpack.c.l.b16 %v622
        %v649 = vpack.c.b16 %v647, %v646
        %v650 = vpack.c.b16 %v648, %v648
        %v653 = vunpack.c.l.b16 %v623
        %v654 = vunpack.c.l.b16 %v624
        %v655 = vpack.c.b16 %v654, %v653
        %vm657 = vcmask 130048
        %v659 = vsel %vm657, %v649, 0
        %v662 = vsel %vm657, %v650, 0
        %664 = vmatprep.subr.bf16.mxu0 0
        %665 = vmatpush1.bf16.msra.mxu0 %v655
        %666 = vmatprep.subr.bf16.mxu0 0
        %667 = vmatpush1.bf16.msra.mxu0 0
        %668 = vmatprep.subr.bf16.mxu0 0
        %669 = vmatpush1.bf16.msra.mxu0 0
        %670 = vmatprep.subr.bf16.mxu0 0
        %671 = vmatpush1.bf16.msra.mxu0 0
        %672 = vmatprep.subr.bf16.mxu0 0
        %673 = vmatpush1.bf16.msra.mxu0 0
        %674 = vmatprep.subr.bf16.mxu0 0
        %675 = vmatpush1.bf16.msra.mxu0 0
        %676 = vmatprep.subr.bf16.mxu0 0
        %677 = vmatpush1.bf16.msra.mxu0 0
        %678 = vmatprep.subr.bf16.mxu0 0
        %679 = vmatpush1.bf16.msra.mxu0 0
        %680 = vmatprep.subr.bf16.mxu0 0
        %681 = vmatpush1.bf16.msra.mxu0 0
        %682 = vmatprep.subr.bf16.mxu0 0
        %683 = vmatpush1.bf16.msra.mxu0 0
        %684 = vmatprep.subr.bf16.mxu0 0
        %685 = vmatpush1.bf16.msra.mxu0 0
        %686 = vmatprep.subr.bf16.mxu0 0
        %687 = vmatpush1.bf16.msra.mxu0 0
        %688 = vmatprep.subr.bf16.mxu0 0
        %689 = vmatpush1.bf16.msra.mxu0 0
        %690 = vmatprep.subr.bf16.mxu0 0
        %691 = vmatpush1.bf16.msra.mxu0 0
        %692 = vmatprep.subr.bf16.mxu0 0
        %693 = vmatpush1.bf16.msra.mxu0 0
        %694 = vmatprep.subr.bf16.mxu0 0
        %695 = vmatpush1.bf16.msra.mxu0 0
        %696 = vmatprep.mubr.bf16.mxu0 0
        %697 = vmatmul.mubr.bf16.gmra.mrb[0].mxu0 %v659
        %v698 = vpop.f32.mrb[0].mxu0
        %v699 = vadd.f32 %v631, %v698
        %v700 = vpop.f32.mrb[0].mxu0
        %v701 = vpop.f32.mrb[0].mxu0
        %v702 = vadd.f32 %v636, %v701
        %v703 = vpop.f32.mrb[0].mxu0
        %704 = vmatprep.mubr.bf16.mxu0 0
        %705 = vmatmul.mubr.bf16.gmra.mrb[0].mxu0 %v662
        %v706 = vpop.f32.mrb[0].mxu0
        %v707 = vadd.f32 %v641, %v706
        %v708 = vpop.f32.mrb[0].mxu0
        %v709 = vpop.f32.mrb[0].mxu0
        %v710 = vpop.f32.mrb[0].mxu0
        %711 = vdwg.mxu0
        %v712 = vld [vmem:[%s3] sm:$0x1]
        %v714 = vlaneseq
        %v715 = vshrl.u32 %v714, 7
        %v716 = vsub.s32 0, %v715
        %v717 = vrot.slane %v712, %v716
        %v719 = vmul.f32 %v699, %v717
        %v720 = vmul.f32 %v702, %v717
        %vm721 = vcmask 1048544
        %722 = vst.msk [vmem:[#allocation2] sm:$0xff] %vm721, 0
        %vm723 = vcmask 31744
        %724 = vst.msk [vmem:[#allocation2 + $0x10] sm:$0xff] %vm723, 0
        %v725 = vpack.c.bf16 %v720, %v719
        %726 = vst [vmem:[#allocation2 + $0x8] sm:$0xff] %v725
        %v727 = vld [vmem:[%s4] sm:$0xf]
        %v728 = vld [vmem:[%s4 + $0x4] sm:$0xf]
        %v729 = vld [vmem:[%s4 + $0x8] sm:$0xf]
        %v733 = vunpack.c.l.b16 %v727
        %v734 = vunpack.c.l.b16 %v728
        %v735 = vunpack.c.l.b16 %v729
        %v736 = vpack.c.b16 %v734, %v733
        %v737 = vpack.c.b16 %v735, %v735
        %v739 = vsel %vm657, %v736, 0
        %v742 = vsel %vm657, %v737, 0
        %744 = vmatprep.subr.bf16.mxu0 0
        %745 = vmatpush1.bf16.msra.mxu0 %v725
        %746 = vmatprep.subr.bf16.mxu0 0
        %747 = vmatpush1.bf16.msra.mxu0 0
        %748 = vmatprep.subr.bf16.mxu0 0
        %749 = vmatpush1.bf16.msra.mxu0 0
        %750 = vmatprep.subr.bf16.mxu0 0
        %751 = vmatpush1.bf16.msra.mxu0 0
        %752 = vmatprep.subr.bf16.mxu0 0
        %753 = vmatpush1.bf16.msra.mxu0 0
        %754 = vmatprep.subr.bf16.mxu0 0
        %755 = vmatpush1.bf16.msra.mxu0 0
        %756 = vmatprep.subr.bf16.mxu0 0
        %757 = vmatpush1.bf16.msra.mxu0 0
        %758 = vmatprep.subr.bf16.mxu0 0
        %759 = vmatpush1.bf16.msra.mxu0 0
        %760 = vmatprep.subr.bf16.mxu0 0
        %761 = vmatpush1.bf16.msra.mxu0 0
        %762 = vmatprep.subr.bf16.mxu0 0
        %763 = vmatpush1.bf16.msra.mxu0 0
        %764 = vmatprep.subr.bf16.mxu0 0
        %765 = vmatpush1.bf16.msra.mxu0 0
        %766 = vmatprep.subr.bf16.mxu0 0
        %767 = vmatpush1.bf16.msra.mxu0 0
        %768 = vmatprep.subr.bf16.mxu0 0
        %769 = vmatpush1.bf16.msra.mxu0 0
        %770 = vmatprep.subr.bf16.mxu0 0
        %771 = vmatpush1.bf16.msra.mxu0 0
        %772 = vmatprep.subr.bf16.mxu0 0
        %773 = vmatpush1.bf16.msra.mxu0 0
        %774 = vmatprep.subr.bf16.mxu0 0
        %775 = vmatpush1.bf16.msra.mxu0 0
        %776 = vmatprep.mubr.bf16.mxu0 0
        %777 = vmatmul.mubr.bf16.gmra.mrb[0].mxu0 %v739
        %v778 = vpop.f32.mrb[0].mxu0
        %v779 = vadd.f32 0.0, %v778
        %v780 = vpop.f32.mrb[0].mxu0
        %v781 = vpop.f32.mrb[0].mxu0
        %v782 = vadd.f32 0.0, %v781
        %v783 = vpop.f32.mrb[0].mxu0
        %784 = vmatprep.mubr.bf16.mxu0 0
        %785 = vmatmul.mubr.bf16.gmra.mrb[0].mxu0 %v742
        %v786 = vpop.f32.mrb[0].mxu0
        %v787 = vadd.f32 0.0, %v786
        %v788 = vpop.f32.mrb[0].mxu0
        %v789 = vpop.f32.mrb[0].mxu0
        %v790 = vpop.f32.mrb[0].mxu0
        %791 = vdwg.mxu0
        %v792 = vld [vmem:[%s5] sm:$0xf]
        %v793 = vld [vmem:[%s5 + $0x4] sm:$0xf]
        %v794 = vld [vmem:[%s5 + $0x8] sm:$0xf]
        %v795 = vld [vmem:[%s6] sm:$0xf]
        %v796 = vld [vmem:[%s6 + $0x4] sm:$0xf]
        %v797 = vld [vmem:[%s6 + $0x8] sm:$0xf]
        %v798 = vld [vmem:[%s7] sm:$0xff]
        %v799 = vld [vmem:[%s7 + $0x8] sm:$0xff]
        %v800 = vld [vmem:[%s7 + $0x10] sm:$0xff]
        %v801 = vld [vmem:[%s8] sm:$0xff]
        %v802 = vld [vmem:[%s8 + $0x8] sm:$0xff]
        %v803 = vld [vmem:[%s8 + $0x10] sm:$0xff]
        %v804 = vld [vmem:[%s9] sm:$0xff]
        %v805 = vld [vmem:[%s9 + $0x8] sm:$0xff]
        %v806 = vld [vmem:[%s9 + $0x10] sm:$0xff]
        %v807 = vld [vmem:[%s16] sm:$0xff]
        %v808 = vld [vmem:[%s16 + $0x8] sm:$0xff]
        %v809 = vld [vmem:[%s16 + $0x10] sm:$0xff]
        %v810 = vld [vmem:[%s16 + $0x18] sm:$0xff]
        %v811 = vld [vmem:[%s16 + $0x20] sm:$0xff]
        %v812 = vld [vmem:[%s16 + $0x28] sm:$0xff]
        %v813 = vld [vmem:[%s16 + $0x30] sm:$0xff]
        %v814 = vld [vmem:[%s16 + $0x38] sm:$0xff]
        %v815 = vld [vmem:[%s16 + $0x40] sm:$0xff]
        %v816 = vld [vmem:[%s16 + $0x48] sm:$0xff]
        %v817 = vld [vmem:[%s16 + $0x50] sm:$0xff]
        %v818 = vld [vmem:[%s16 + $0x58] sm:$0xff]
        %v819 = vld [vmem:[%s16 + $0x60] sm:$0xff]
        %v820 = vld [vmem:[%s16 + $0x68] sm:$0xff]
        %v821 = vld [vmem:[%s16 + $0x70] sm:$0xff]
        %v822 = vld [vmem:[%s16 + $0x78] sm:$0xff]
        %v823 = vld [vmem:[%s10] sm:$0xf]
        %v824 = vld [vmem:[%s10 + $0x4] sm:$0xf]
        %v825 = vld [vmem:[%s10 + $0x8] sm:$0xf]
        %v826 = vld [vmem:[#allocation2] sm:$0xff]
        %v827 = vld [vmem:[#allocation2 + $0x8] sm:$0xff]
        %830 = vrot.lane.b32.xlu0 %v826, 1
        %v831 = vpop.permute.xlu0 %830
        %832 = vrot.lane.b32.xlu0 %v827, 1
        %v833 = vpop.permute.xlu0 %832
        %vm834 = vcmask 7168
        %v835 = vsel %vm834, %v831, %v833
        %v838 = vsel %vm657, %v792, 0
        %840 = vmatprep.subr.bf16.mxu0 0
        %841 = vmatpush1.bf16.msra.mxu0 %v835
        %842 = vmatprep.subr.bf16.mxu0 0
        %843 = vmatpush1.bf16.msra.mxu0 0
        %844 = vmatprep.subr.bf16.mxu0 0
        %845 = vmatpush1.bf16.msra.mxu0 0
        %846 = vmatprep.subr.bf16.mxu0 0
        %847 = vmatpush1.bf16.msra.mxu0 0
        %848 = vmatprep.subr.bf16.mxu0 0
        %849 = vmatpush1.bf16.msra.mxu0 0
        %850 = vmatprep.subr.bf16.mxu0 0
        %851 = vmatpush1.bf16.msra.mxu0 0
        %852 = vmatprep.subr.bf16.mxu0 0
        %853 = vmatpush1.bf16.msra.mxu0 0
        %854 = vmatprep.subr.bf16.mxu0 0
        %855 = vmatpush1.bf16.msra.mxu0 0
        %856 = vmatprep.subr.bf16.mxu0 0
        %857 = vmatpush1.bf16.msra.mxu0 0
        %858 = vmatprep.subr.bf16.mxu0 0
        %859 = vmatpush1.bf16.msra.mxu0 0
        %860 = vmatprep.subr.bf16.mxu0 0
        %861 = vmatpush1.bf16.msra.mxu0 0
        %862 = vmatprep.subr.bf16.mxu0 0
        %863 = vmatpush1.bf16.msra.mxu0 0
        %864 = vmatprep.subr.bf16.mxu0 0
        %865 = vmatpush1.bf16.msra.mxu0 0
        %866 = vmatprep.subr.bf16.mxu0 0
        %867 = vmatpush1.bf16.msra.mxu0 0
        %868 = vmatprep.subr.bf16.mxu0 0
        %869 = vmatpush1.bf16.msra.mxu0 0
        %870 = vmatprep.subr.bf16.mxu0 0
        %871 = vmatpush1.bf16.msra.mxu0 0
        %872 = vmatprep.mubr.bf16.mxu0 0
        %873 = vmatmul.mubr.bf16.gmra.mrb[0].mxu0 %v838
        %v874 = vpop.f32.mrb[0].mxu0
        %v875 = vadd.f32 0.0, %v874
        %v876 = vpop.f32.mrb[0].mxu0
        %v877 = vpop.f32.mrb[0].mxu0
        %v878 = vpop.f32.mrb[0].mxu0
        %879 = vdwg.mxu0
        %v880 = vadd.f32 %v779, %v875
        %v881 = vld [vmem:[#allocation2 + $0x8] sm:$0xff]
        %v882 = vld [vmem:[#allocation2 + $0x10] sm:$0xff]
        %885 = vrot.lane.b32.xlu0 %v881, 127
        %v886 = vpop.permute.xlu0 %885
        %887 = vrot.lane.b32.xlu0 %v882, 127
        %v888 = vpop.permute.xlu0 %887
        %vm889 = vcmask 1039360
        %v890 = vsel %vm889, %v886, %v888
        %v893 = vsel %vm657, %v795, 0
        %895 = vmatprep.subr.bf16.mxu0 0
        %896 = vmatpush1.bf16.msra.mxu0 %v890
        %897 = vmatprep.subr.bf16.mxu0 0
        %898 = vmatpush1.bf16.msra.mxu0 0
        %899 = vmatprep.subr.bf16.mxu0 0
        %900 = vmatpush1.bf16.msra.mxu0 0
        %901 = vmatprep.subr.bf16.mxu0 0
        %902 = vmatpush1.bf16.msra.mxu0 0
        %903 = vmatprep.subr.bf16.mxu0 0
        %904 = vmatpush1.bf16.msra.mxu0 0
        %905 = vmatprep.subr.bf16.mxu0 0
        %906 = vmatpush1.bf16.msra.mxu0 0
        %907 = vmatprep.subr.bf16.mxu0 0
        %908 = vmatpush1.bf16.msra.mxu0 0
        %909 = vmatprep.subr.bf16.mxu0 0
        %910 = vmatpush1.bf16.msra.mxu0 0
        %911 = vmatprep.subr.bf16.mxu0 0
        %912 = vmatpush1.bf16.msra.mxu0 0
        %913 = vmatprep.subr.bf16.mxu0 0
        %914 = vmatpush1.bf16.msra.mxu0 0
        %915 = vmatprep.subr.bf16.mxu0 0
        %916 = vmatpush1.bf16.msra.mxu0 0
        %917 = vmatprep.subr.bf16.mxu0 0
        %918 = vmatpush1.bf16.msra.mxu0 0
        %919 = vmatprep.subr.bf16.mxu0 0
        %920 = vmatpush1.bf16.msra.mxu0 0
        %921 = vmatprep.subr.bf16.mxu0 0
        %922 = vmatpush1.bf16.msra.mxu0 0
        %923 = vmatprep.subr.bf16.mxu0 0
        %924 = vmatpush1.bf16.msra.mxu0 0
        %925 = vmatprep.subr.bf16.mxu0 0
        %926 = vmatpush1.bf16.msra.mxu0 0
        %927 = vmatprep.mubr.bf16.mxu0 0
        %928 = vmatmul.mubr.bf16.gmra.mrb[0].mxu0 %v893
        %v929 = vpop.f32.mrb[0].mxu0
        %v930 = vadd.f32 0.0, %v929
        %v931 = vpop.f32.mrb[0].mxu0
        %v932 = vpop.f32.mrb[0].mxu0
        %v933 = vpop.f32.mrb[0].mxu0
        %934 = vdwg.mxu0
        %v935 = vadd.f32 %v880, %v930
        %937 = vset.pattern.permute.xlu0 0
        %938 = vperm.xlu0 %937, %v798
        %v939 = vpop.permute.xlu0 %938
        %v941 = vadd.f32 %v935, %v939
        %943 = vset.pattern.permute.xlu0 0
        %944 = vperm.xlu0 %943, %v801
        %v945 = vpop.permute.xlu0 %944
        %v947 = vmul.f32 %v941, %v945
        %949 = vset.pattern.permute.xlu0 0
        %950 = vperm.xlu0 %949, %v804
        %v951 = vpop.permute.xlu0 %950
        %v953 = vadd.f32 %v947, %v951
        %v954 = vmax.f32 %v953, 0.0
        %955 = vmatprep.subr.mxu0 0.0
        %956 = vmatpush1.msra.mxu0 %v807
        %957 = vmatprep.subr.mxu0 0.0
        %958 = vmatpush1.msra.mxu0 %v808
        %959 = vmatprep.subr.mxu0 0.0
        %960 = vmatpush1.msra.mxu0 %v809
        %961 = vmatprep.subr.mxu0 0.0
        %962 = vmatpush1.msra.mxu0 %v810
        %963 = vmatprep.subr.mxu0 0.0
        %964 = vmatpush1.msra.mxu0 %v811
        %965 = vmatprep.subr.mxu0 0.0
        %966 = vmatpush1.msra.mxu0 %v812
        %967 = vmatprep.subr.mxu0 0.0
        %968 = vmatpush1.msra.mxu0 %v813
        %969 = vmatprep.subr.mxu0 0.0
        %970 = vmatpush1.msra.mxu0 %v814
        %971 = vmatprep.subr.mxu0 0.0
        %972 = vmatpush1.msra.mxu0 %v815
        %973 = vmatprep.subr.mxu0 0.0
        %974 = vmatpush1.msra.mxu0 %v816
        %975 = vmatprep.subr.mxu0 0.0
        %976 = vmatpush1.msra.mxu0 %v817
        %977 = vmatprep.subr.mxu0 0.0
        %978 = vmatpush1.msra.mxu0 %v818
        %979 = vmatprep.subr.mxu0 0.0
        %980 = vmatpush1.msra.mxu0 %v819
        %981 = vmatprep.subr.mxu0 0.0
        %982 = vmatpush1.msra.mxu0 %v820
        %983 = vmatprep.subr.mxu0 0.0
        %984 = vmatpush1.msra.mxu0 %v821
        %985 = vmatprep.subr.mxu0 0.0
        %986 = vmatpush1.msra.mxu0 %v822
        %987 = vmatprep.subr.mxu0 0.0
        %988 = vmatpush1.msra.mxu0 0.0
        %989 = vmatprep.subr.mxu0 0.0
        %990 = vmatpush1.msra.mxu0 0.0
        %991 = vmatprep.subr.mxu0 0.0
        %992 = vmatpush1.msra.mxu0 0.0
        %993 = vmatprep.subr.mxu0 0.0
        %994 = vmatpush1.msra.mxu0 0.0
        %995 = vmatprep.subr.mxu0 0.0
        %996 = vmatpush1.msra.mxu0 0.0
        %997 = vmatprep.subr.mxu0 0.0
        %998 = vmatpush1.msra.mxu0 0.0
        %999 = vmatprep.subr.mxu0 0.0
        %1000 = vmatpush1.msra.mxu0 0.0
        %1001 = vmatprep.subr.mxu0 0.0
        %1002 = vmatpush1.msra.mxu0 0.0
        %1003 = vmatprep.subr.mxu0 0.0
        %1004 = vmatpush1.msra.mxu0 0.0
        %1005 = vmatprep.subr.mxu0 0.0
        %1006 = vmatpush1.msra.mxu0 0.0
        %1007 = vmatprep.subr.mxu0 0.0
        %1008 = vmatpush1.msra.mxu0 0.0
        %1009 = vmatprep.subr.mxu0 0.0
        %1010 = vmatpush1.msra.mxu0 0.0
        %1011 = vmatprep.subr.mxu0 0.0
        %1012 = vmatpush1.msra.mxu0 0.0
        %1013 = vmatprep.subr.mxu0 0.0
        %1014 = vmatpush1.msra.mxu0 0.0
        %1015 = vmatprep.subr.mxu0 0.0
        %1016 = vmatpush1.msra.mxu0 0.0
        %1017 = vmatprep.subr.mxu0 0.0
        %1018 = vmatpush1.msra.mxu0 0.0
        %1019 = vmatprep.mubr.f32.mxu0 0.0
        %1020 = vmatmul.mubr.f32.gmra.mrb[0].mxu0 %v954
        %v1021 = vpop.f32.mrb[0].mxu0
        %v1022 = vadd.f32 0.0, %v1021
        %v1023 = vpop.f32.mrb[0].mxu0
        %1024 = vdwg.mxu0
        %1025 = vrot.lane.b32.xlu0 %v826, 2
        %v1026 = vpop.permute.xlu0 %1025
        %1027 = vrot.lane.b32.xlu0 %v827, 2
        %v1028 = vpop.permute.xlu0 %1027
        %vm1029 = vcmask 15360
        %v1030 = vsel %vm1029, %v1026, %v1028
        %v1033 = vsel %vm657, %v793, 0
        %1035 = vmatprep.subr.bf16.mxu0 0
        %1036 = vmatpush1.bf16.msra.mxu0 %v1030
        %1037 = vmatprep.subr.bf16.mxu0 0
        %1038 = vmatpush1.bf16.msra.mxu0 0
        %1039 = vmatprep.subr.bf16.mxu0 0
        %1040 = vmatpush1.bf16.msra.mxu0 0
        %1041 = vmatprep.subr.bf16.mxu0 0
        %1042 = vmatpush1.bf16.msra.mxu0 0
        %1043 = vmatprep.subr.bf16.mxu0 0
        %1044 = vmatpush1.bf16.msra.mxu0 0
        %1045 = vmatprep.subr.bf16.mxu0 0
        %1046 = vmatpush1.bf16.msra.mxu0 0
        %1047 = vmatprep.subr.bf16.mxu0 0
        %1048 = vmatpush1.bf16.msra.mxu0 0
        %1049 = vmatprep.subr.bf16.mxu0 0
        %1050 = vmatpush1.bf16.msra.mxu0 0
        %1051 = vmatprep.subr.bf16.mxu0 0
        %1052 = vmatpush1.bf16.msra.mxu0 0
        %1053 = vmatprep.subr.bf16.mxu0 0
        %1054 = vmatpush1.bf16.msra.mxu0 0
        %1055 = vmatprep.subr.bf16.mxu0 0
        %1056 = vmatpush1.bf16.msra.mxu0 0
        %1057 = vmatprep.subr.bf16.mxu0 0
        %1058 = vmatpush1.bf16.msra.mxu0 0
        %1059 = vmatprep.subr.bf16.mxu0 0
        %1060 = vmatpush1.bf16.msra.mxu0 0
        %1061 = vmatprep.subr.bf16.mxu0 0
        %1062 = vmatpush1.bf16.msra.mxu0 0
        %1063 = vmatprep.subr.bf16.mxu0 0
        %1064 = vmatpush1.bf16.msra.mxu0 0
        %1065 = vmatprep.subr.bf16.mxu0 0
        %1066 = vmatpush1.bf16.msra.mxu0 0
        %1067 = vmatprep.mubr.bf16.mxu0 0
        %1068 = vmatmul.mubr.bf16.gmra.mrb[0].mxu0 %v1033
        %v1069 = vpop.f32.mrb[0].mxu0
        %v1070 = vadd.f32 0.0, %v1069
        %v1071 = vpop.f32.mrb[0].mxu0
        %v1072 = vpop.f32.mrb[0].mxu0
        %v1073 = vpop.f32.mrb[0].mxu0
        %1074 = vdwg.mxu0
        %v1075 = vadd.f32 %v782, %v1070
        %1076 = vrot.lane.b32.xlu0 %v881, 126
        %v1077 = vpop.permute.xlu0 %1076
        %1078 = vrot.lane.b32.xlu0 %v882, 126
        %v1079 = vpop.permute.xlu0 %1078
        %vm1080 = vcmask 1031168
        %v1081 = vsel %vm1080, %v1077, %v1079
        %v1084 = vsel %vm657, %v796, 0
        %1086 = vmatprep.subr.bf16.mxu0 0
        %1087 = vmatpush1.bf16.msra.mxu0 %v1081
        %1088 = vmatprep.subr.bf16.mxu0 0
        %1089 = vmatpush1.bf16.msra.mxu0 0
        %1090 = vmatprep.subr.bf16.mxu0 0
        %1091 = vmatpush1.bf16.msra.mxu0 0
        %1092 = vmatprep.subr.bf16.mxu0 0
        %1093 = vmatpush1.bf16.msra.mxu0 0
        %1094 = vmatprep.subr.bf16.mxu0 0
        %1095 = vmatpush1.bf16.msra.mxu0 0
        %1096 = vmatprep.subr.bf16.mxu0 0
        %1097 = vmatpush1.bf16.msra.mxu0 0
        %1098 = vmatprep.subr.bf16.mxu0 0
        %1099 = vmatpush1.bf16.msra.mxu0 0
        %1100 = vmatprep.subr.bf16.mxu0 0
        %1101 = vmatpush1.bf16.msra.mxu0 0
        %1102 = vmatprep.subr.bf16.mxu0 0
        %1103 = vmatpush1.bf16.msra.mxu0 0
        %1104 = vmatprep.subr.bf16.mxu0 0
        %1105 = vmatpush1.bf16.msra.mxu0 0
        %1106 = vmatprep.subr.bf16.mxu0 0
        %1107 = vmatpush1.bf16.msra.mxu0 0
        %1108 = vmatprep.subr.bf16.mxu0 0
        %1109 = vmatpush1.bf16.msra.mxu0 0
        %1110 = vmatprep.subr.bf16.mxu0 0
        %1111 = vmatpush1.bf16.msra.mxu0 0
        %1112 = vmatprep.subr.bf16.mxu0 0
        %1113 = vmatpush1.bf16.msra.mxu0 0
        %1114 = vmatprep.subr.bf16.mxu0 0
        %1115 = vmatpush1.bf16.msra.mxu0 0
        %1116 = vmatprep.subr.bf16.mxu0 0
        %1117 = vmatpush1.bf16.msra.mxu0 0
        %1118 = vmatprep.mubr.bf16.mxu0 0
        %1119 = vmatmul.mubr.bf16.gmra.mrb[0].mxu0 %v1084
        %v1120 = vpop.f32.mrb[0].mxu0
        %v1121 = vadd.f32 0.0, %v1120
        %v1122 = vpop.f32.mrb[0].mxu0
        %v1123 = vpop.f32.mrb[0].mxu0
        %v1124 = vpop.f32.mrb[0].mxu0
        %1125 = vdwg.mxu0
        %v1126 = vadd.f32 %v1075, %v1121
        %1128 = vset.pattern.permute.xlu0 0
        %1129 = vperm.xlu0 %1128, %v799
        %v1130 = vpop.permute.xlu0 %1129
        %v1132 = vadd.f32 %v1126, %v1130
        %1134 = vset.pattern.permute.xlu0 0
        %1135 = vperm.xlu0 %1134, %v802
        %v1136 = vpop.permute.xlu0 %1135
        %v1138 = vmul.f32 %v1132, %v1136
        %1140 = vset.pattern.permute.xlu0 0
        %1141 = vperm.xlu0 %1140, %v805
        %v1142 = vpop.permute.xlu0 %1141
        %v1144 = vadd.f32 %v1138, %v1142
        %v1145 = vmax.f32 %v1144, 0.0
        %1146 = vmatprep.subr.mxu0 0.0
        %1147 = vmatpush1.msra.mxu0 %v807
        %1148 = vmatprep.subr.mxu0 0.0
        %1149 = vmatpush1.msra.mxu0 %v808
        %1150 = vmatprep.subr.mxu0 0.0
        %1151 = vmatpush1.msra.mxu0 %v809
        %1152 = vmatprep.subr.mxu0 0.0
        %1153 = vmatpush1.msra.mxu0 %v810
        %1154 = vmatprep.subr.mxu0 0.0
        %1155 = vmatpush1.msra.mxu0 %v811
        %1156 = vmatprep.subr.mxu0 0.0
        %1157 = vmatpush1.msra.mxu0 %v812
        %1158 = vmatprep.subr.mxu0 0.0
        %1159 = vmatpush1.msra.mxu0 %v813
        %1160 = vmatprep.subr.mxu0 0.0
        %1161 = vmatpush1.msra.mxu0 %v814
        %1162 = vmatprep.subr.mxu0 0.0
        %1163 = vmatpush1.msra.mxu0 %v815
        %1164 = vmatprep.subr.mxu0 0.0
        %1165 = vmatpush1.msra.mxu0 %v816
        %1166 = vmatprep.subr.mxu0 0.0
        %1167 = vmatpush1.msra.mxu0 %v817
        %1168 = vmatprep.subr.mxu0 0.0
        %1169 = vmatpush1.msra.mxu0 %v818
        %1170 = vmatprep.subr.mxu0 0.0
        %1171 = vmatpush1.msra.mxu0 %v819
        %1172 = vmatprep.subr.mxu0 0.0
        %1173 = vmatpush1.msra.mxu0 %v820
        %1174 = vmatprep.subr.mxu0 0.0
        %1175 = vmatpush1.msra.mxu0 %v821
        %1176 = vmatprep.subr.mxu0 0.0
        %1177 = vmatpush1.msra.mxu0 %v822
        %1178 = vmatprep.subr.mxu0 0.0
        %1179 = vmatpush1.msra.mxu0 0.0
        %1180 = vmatprep.subr.mxu0 0.0
        %1181 = vmatpush1.msra.mxu0 0.0
        %1182 = vmatprep.subr.mxu0 0.0
        %1183 = vmatpush1.msra.mxu0 0.0
        %1184 = vmatprep.subr.mxu0 0.0
        %1185 = vmatpush1.msra.mxu0 0.0
        %1186 = vmatprep.subr.mxu0 0.0
        %1187 = vmatpush1.msra.mxu0 0.0
        %1188 = vmatprep.subr.mxu0 0.0
        %1189 = vmatpush1.msra.mxu0 0.0
        %1190 = vmatprep.subr.mxu0 0.0
        %1191 = vmatpush1.msra.mxu0 0.0
        %1192 = vmatprep.subr.mxu0 0.0
        %1193 = vmatpush1.msra.mxu0 0.0
        %1194 = vmatprep.subr.mxu0 0.0
        %1195 = vmatpush1.msra.mxu0 0.0
        %1196 = vmatprep.subr.mxu0 0.0
        %1197 = vmatpush1.msra.mxu0 0.0
        %1198 = vmatprep.subr.mxu0 0.0
        %1199 = vmatpush1.msra.mxu0 0.0
        %1200 = vmatprep.subr.mxu0 0.0
        %1201 = vmatpush1.msra.mxu0 0.0
        %1202 = vmatprep.subr.mxu0 0.0
        %1203 = vmatpush1.msra.mxu0 0.0
        %1204 = vmatprep.subr.mxu0 0.0
        %1205 = vmatpush1.msra.mxu0 0.0
        %1206 = vmatprep.subr.mxu0 0.0
        %1207 = vmatpush1.msra.mxu0 0.0
        %1208 = vmatprep.subr.mxu0 0.0
        %1209 = vmatpush1.msra.mxu0 0.0
        %1210 = vmatprep.mubr.f32.mxu0 0.0
        %1211 = vmatmul.mubr.f32.gmra.mrb[0].mxu0 %v1145
        %v1212 = vpop.f32.mrb[0].mxu0
        %v1213 = vadd.f32 0.0, %v1212
        %v1214 = vpop.f32.mrb[0].mxu0
        %1215 = vdwg.mxu0
        %vm1216 = vcmask 64512
        %v1218 = vsel %vm1216, %v824, 0
        %1220 = vmatprep.subr.mxu0 0.0
        %1221 = vmatpush1.msra.mxu0 %v1213
        %1222 = vmatprep.subr.mxu0 0.0
        %1223 = vmatpush1.msra.mxu0 0.0
        %1224 = vmatprep.subr.mxu0 0.0
        %1225 = vmatpush1.msra.mxu0 0.0
        %1226 = vmatprep.subr.mxu0 0.0
        %1227 = vmatpush1.msra.mxu0 0.0
        %1228 = vmatprep.subr.mxu0 0.0
        %1229 = vmatpush1.msra.mxu0 0.0
        %1230 = vmatprep.subr.mxu0 0.0
        %1231 = vmatpush1.msra.mxu0 0.0
        %1232 = vmatprep.subr.mxu0 0.0
        %1233 = vmatpush1.msra.mxu0 0.0
        %1234 = vmatprep.subr.mxu0 0.0
        %1235 = vmatpush1.msra.mxu0 0.0
        %1236 = vmatprep.subr.mxu0 0.0
        %1237 = vmatpush1.msra.mxu0 0.0
        %1238 = vmatprep.subr.mxu0 0.0
        %1239 = vmatpush1.msra.mxu0 0.0
        %1240 = vmatprep.subr.mxu0 0.0
        %1241 = vmatpush1.msra.mxu0 0.0
        %1242 = vmatprep.subr.mxu0 0.0
        %1243 = vmatpush1.msra.mxu0 0.0
        %1244 = vmatprep.subr.mxu0 0.0
        %1245 = vmatpush1.msra.mxu0 0.0
        %1246 = vmatprep.subr.mxu0 0.0
        %1247 = vmatpush1.msra.mxu0 0.0
        %1248 = vmatprep.subr.mxu0 0.0
        %1249 = vmatpush1.msra.mxu0 0.0
        %1250 = vmatprep.subr.mxu0 0.0
        %1251 = vmatpush1.msra.mxu0 0.0
        %1252 = vmatprep.subr.mxu0 0.0
        %1253 = vmatpush1.msra.mxu0 0.0
        %1254 = vmatprep.subr.mxu0 0.0
        %1255 = vmatpush1.msra.mxu0 0.0
        %1256 = vmatprep.subr.mxu0 0.0
        %1257 = vmatpush1.msra.mxu0 0.0
        %1258 = vmatprep.subr.mxu0 0.0
        %1259 = vmatpush1.msra.mxu0 0.0
        %1260 = vmatprep.subr.mxu0 0.0
        %1261 = vmatpush1.msra.mxu0 0.0
        %1262 = vmatprep.subr.mxu0 0.0
        %1263 = vmatpush1.msra.mxu0 0.0
        %1264 = vmatprep.subr.mxu0 0.0
        %1265 = vmatpush1.msra.mxu0 0.0
        %1266 = vmatprep.subr.mxu0 0.0
        %1267 = vmatpush1.msra.mxu0 0.0
        %1268 = vmatprep.subr.mxu0 0.0
        %1269 = vmatpush1.msra.mxu0 0.0
        %1270 = vmatprep.subr.mxu0 0.0
        %1271 = vmatpush1.msra.mxu0 0.0
        %1272 = vmatprep.subr.mxu0 0.0
        %1273 = vmatpush1.msra.mxu0 0.0
        %1274 = vmatprep.subr.mxu0 0.0
        %1275 = vmatpush1.msra.mxu0 0.0
        %1276 = vmatprep.subr.mxu0 0.0
        %1277 = vmatpush1.msra.mxu0 0.0
        %1278 = vmatprep.subr.mxu0 0.0
        %1279 = vmatpush1.msra.mxu0 0.0
        %1280 = vmatprep.subr.mxu0 0.0
        %1281 = vmatpush1.msra.mxu0 0.0
        %1282 = vmatprep.subr.mxu0 0.0
        %1283 = vmatpush1.msra.mxu0 0.0
        %1284 = vmatprep.mubr.f32.mxu0 0.0
        %1285 = vmatmul.mubr.f32.gmra.mrb[0].mxu0 %v1218
        %v1286 = vpop.f32.mrb[0].mxu0
        %v1287 = vadd.f32 0.0, %v1286
        %v1288 = vpop.f32.mrb[0].mxu0
        %1289 = vdwg.mxu0
        %v1291 = vsel %vm1216, %v823, 0
        %1293 = vmatprep.subr.mxu0 0.0
        %1294 = vmatpush1.msra.mxu0 %v1022
        %1295 = vmatprep.subr.mxu0 0.0
        %1296 = vmatpush1.msra.mxu0 0.0
        %1297 = vmatprep.subr.mxu0 0.0
        %1298 = vmatpush1.msra.mxu0 0.0
        %1299 = vmatprep.subr.mxu0 0.0
        %1300 = vmatpush1.msra.mxu0 0.0
        %1301 = vmatprep.subr.mxu0 0.0
        %1302 = vmatpush1.msra.mxu0 0.0
        %1303 = vmatprep.subr.mxu0 0.0
        %1304 = vmatpush1.msra.mxu0 0.0
        %1305 = vmatprep.subr.mxu0 0.0
        %1306 = vmatpush1.msra.mxu0 0.0
        %1307 = vmatprep.subr.mxu0 0.0
        %1308 = vmatpush1.msra.mxu0 0.0
        %1309 = vmatprep.subr.mxu0 0.0
        %1310 = vmatpush1.msra.mxu0 0.0
        %1311 = vmatprep.subr.mxu0 0.0
        %1312 = vmatpush1.msra.mxu0 0.0
        %1313 = vmatprep.subr.mxu0 0.0
        %1314 = vmatpush1.msra.mxu0 0.0
        %1315 = vmatprep.subr.mxu0 0.0
        %1316 = vmatpush1.msra.mxu0 0.0
        %1317 = vmatprep.subr.mxu0 0.0
        %1318 = vmatpush1.msra.mxu0 0.0
        %1319 = vmatprep.subr.mxu0 0.0
        %1320 = vmatpush1.msra.mxu0 0.0
        %1321 = vmatprep.subr.mxu0 0.0
        %1322 = vmatpush1.msra.mxu0 0.0
        %1323 = vmatprep.subr.mxu0 0.0
        %1324 = vmatpush1.msra.mxu0 0.0
        %1325 = vmatprep.subr.mxu0 0.0
        %1326 = vmatpush1.msra.mxu0 0.0
        %1327 = vmatprep.subr.mxu0 0.0
        %1328 = vmatpush1.msra.mxu0 0.0
        %1329 = vmatprep.subr.mxu0 0.0
        %1330 = vmatpush1.msra.mxu0 0.0
        %1331 = vmatprep.subr.mxu0 0.0
        %1332 = vmatpush1.msra.mxu0 0.0
        %1333 = vmatprep.subr.mxu0 0.0
        %1334 = vmatpush1.msra.mxu0 0.0
        %1335 = vmatprep.subr.mxu0 0.0
        %1336 = vmatpush1.msra.mxu0 0.0
        %1337 = vmatprep.subr.mxu0 0.0
        %1338 = vmatpush1.msra.mxu0 0.0
        %1339 = vmatprep.subr.mxu0 0.0
        %1340 = vmatpush1.msra.mxu0 0.0
        %1341 = vmatprep.subr.mxu0 0.0
        %1342 = vmatpush1.msra.mxu0 0.0
        %1343 = vmatprep.subr.mxu0 0.0
        %1344 = vmatpush1.msra.mxu0 0.0
        %1345 = vmatprep.subr.mxu0 0.0
        %1346 = vmatpush1.msra.mxu0 0.0
        %1347 = vmatprep.subr.mxu0 0.0
        %1348 = vmatpush1.msra.mxu0 0.0
        %1349 = vmatprep.subr.mxu0 0.0
        %1350 = vmatpush1.msra.mxu0 0.0
        %1351 = vmatprep.subr.mxu0 0.0
        %1352 = vmatpush1.msra.mxu0 0.0
        %1353 = vmatprep.subr.mxu0 0.0
        %1354 = vmatpush1.msra.mxu0 0.0
        %1355 = vmatprep.subr.mxu0 0.0
        %1356 = vmatpush1.msra.mxu0 0.0
        %1357 = vmatprep.mubr.f32.mxu0 0.0
        %1358 = vmatmul.mubr.f32.gmra.mrb[0].mxu0 %v1291
        %v1359 = vpop.f32.mrb[0].mxu0
        %v1360 = vadd.f32 %v1287, %v1359
        %v1361 = vpop.f32.mrb[0].mxu0
        %1362 = vdwg.mxu0
        %1363 = vrot.lane.b32.xlu0 %v826, 4
        %v1364 = vpop.permute.xlu0 %1363
        %1365 = vrot.lane.b32.xlu0 %v827, 4
        %v1366 = vpop.permute.xlu0 %1365
        %vm1367 = vcmask 31744
        %v1368 = vsel %vm1367, %v1364, %v1366
        %v1371 = vsel %vm657, %v794, 0
        %1373 = vmatprep.subr.bf16.mxu0 0
        %1374 = vmatpush1.bf16.msra.mxu0 %v1368
        %1375 = vmatprep.subr.bf16.mxu0 0
        %1376 = vmatpush1.bf16.msra.mxu0 0
        %1377 = vmatprep.subr.bf16.mxu0 0
        %1378 = vmatpush1.bf16.msra.mxu0 0
        %1379 = vmatprep.subr.bf16.mxu0 0
        %1380 = vmatpush1.bf16.msra.mxu0 0
        %1381 = vmatprep.subr.bf16.mxu0 0
        %1382 = vmatpush1.bf16.msra.mxu0 0
        %1383 = vmatprep.subr.bf16.mxu0 0
        %1384 = vmatpush1.bf16.msra.mxu0 0
        %1385 = vmatprep.subr.bf16.mxu0 0
        %1386 = vmatpush1.bf16.msra.mxu0 0
        %1387 = vmatprep.subr.bf16.mxu0 0
        %1388 = vmatpush1.bf16.msra.mxu0 0
        %1389 = vmatprep.subr.bf16.mxu0 0
        %1390 = vmatpush1.bf16.msra.mxu0 0
        %1391 = vmatprep.subr.bf16.mxu0 0
        %1392 = vmatpush1.bf16.msra.mxu0 0
        %1393 = vmatprep.subr.bf16.mxu0 0
        %1394 = vmatpush1.bf16.msra.mxu0 0
        %1395 = vmatprep.subr.bf16.mxu0 0
        %1396 = vmatpush1.bf16.msra.mxu0 0
        %1397 = vmatprep.subr.bf16.mxu0 0
        %1398 = vmatpush1.bf16.msra.mxu0 0
        %1399 = vmatprep.subr.bf16.mxu0 0
        %1400 = vmatpush1.bf16.msra.mxu0 0
        %1401 = vmatprep.subr.bf16.mxu0 0
        %1402 = vmatpush1.bf16.msra.mxu0 0
        %1403 = vmatprep.subr.bf16.mxu0 0
        %1404 = vmatpush1.bf16.msra.mxu0 0
        %1405 = vmatprep.mubr.bf16.mxu0 0
        %1406 = vmatmul.mubr.bf16.gmra.mrb[0].mxu0 %v1371
        %v1407 = vpop.f32.mrb[0].mxu0
        %v1408 = vadd.f32 0.0, %v1407
        %v1409 = vpop.f32.mrb[0].mxu0
        %v1410 = vpop.f32.mrb[0].mxu0
        %v1411 = vpop.f32.mrb[0].mxu0
        %1412 = vdwg.mxu0
        %v1413 = vadd.f32 %v787, %v1408
        %1414 = vrot.lane.b32.xlu0 %v881, 124
        %v1415 = vpop.permute.xlu0 %1414
        %1416 = vrot.lane.b32.xlu0 %v882, 124
        %v1417 = vpop.permute.xlu0 %1416
        %vm1418 = vcmask 1014784
        %v1419 = vsel %vm1418, %v1415, %v1417
        %v1422 = vsel %vm657, %v797, 0
        %1424 = vmatprep.subr.bf16.mxu0 0
        %1425 = vmatpush1.bf16.msra.mxu0 %v1419
        %1426 = vmatprep.subr.bf16.mxu0 0
        %1427 = vmatpush1.bf16.msra.mxu0 0
        %1428 = vmatprep.subr.bf16.mxu0 0
        %1429 = vmatpush1.bf16.msra.mxu0 0
        %1430 = vmatprep.subr.bf16.mxu0 0
        %1431 = vmatpush1.bf16.msra.mxu0 0
        %1432 = vmatprep.subr.bf16.mxu0 0
        %1433 = vmatpush1.bf16.msra.mxu0 0
        %1434 = vmatprep.subr.bf16.mxu0 0
        %1435 = vmatpush1.bf16.msra.mxu0 0
        %1436 = vmatprep.subr.bf16.mxu0 0
        %1437 = vmatpush1.bf16.msra.mxu0 0
        %1438 = vmatprep.subr.bf16.mxu0 0
        %1439 = vmatpush1.bf16.msra.mxu0 0
        %1440 = vmatprep.subr.bf16.mxu0 0
        %1441 = vmatpush1.bf16.msra.mxu0 0
        %1442 = vmatprep.subr.bf16.mxu0 0
        %1443 = vmatpush1.bf16.msra.mxu0 0
        %1444 = vmatprep.subr.bf16.mxu0 0
        %1445 = vmatpush1.bf16.msra.mxu0 0
        %1446 = vmatprep.subr.bf16.mxu0 0
        %1447 = vmatpush1.bf16.msra.mxu0 0
        %1448 = vmatprep.subr.bf16.mxu0 0
        %1449 = vmatpush1.bf16.msra.mxu0 0
        %1450 = vmatprep.subr.bf16.mxu0 0
        %1451 = vmatpush1.bf16.msra.mxu0 0
        %1452 = vmatprep.subr.bf16.mxu0 0
        %1453 = vmatpush1.bf16.msra.mxu0 0
        %1454 = vmatprep.subr.bf16.mxu0 0
        %1455 = vmatpush1.bf16.msra.mxu0 0
        %1456 = vmatprep.mubr.bf16.mxu0 0
        %1457 = vmatmul.mubr.bf16.gmra.mrb[0].mxu0 %v1422
        %v1458 = vpop.f32.mrb[0].mxu0
        %v1459 = vadd.f32 0.0, %v1458
        %v1460 = vpop.f32.mrb[0].mxu0
        %v1461 = vpop.f32.mrb[0].mxu0
        %v1462 = vpop.f32.mrb[0].mxu0
        %1463 = vdwg.mxu0
        %v1464 = vadd.f32 %v1413, %v1459
        %1466 = vset.pattern.permute.xlu0 0
        %1467 = vperm.xlu0 %1466, %v800
        %v1468 = vpop.permute.xlu0 %1467
        %v1470 = vadd.f32 %v1464, %v1468
        %1472 = vset.pattern.permute.xlu0 0
        %1473 = vperm.xlu0 %1472, %v803
        %v1474 = vpop.permute.xlu0 %1473
        %v1476 = vmul.f32 %v1470, %v1474
        %1478 = vset.pattern.permute.xlu0 0
        %1479 = vperm.xlu0 %1478, %v806
        %v1480 = vpop.permute.xlu0 %1479
        %v1482 = vadd.f32 %v1476, %v1480
        %v1483 = vmax.f32 %v1482, 0.0
        %1484 = vmatprep.subr.mxu0 0.0
        %1485 = vmatpush1.msra.mxu0 %v807
        %1486 = vmatprep.subr.mxu0 0.0
        %1487 = vmatpush1.msra.mxu0 %v808
        %1488 = vmatprep.subr.mxu0 0.0
        %1489 = vmatpush1.msra.mxu0 %v809
        %1490 = vmatprep.subr.mxu0 0.0
        %1491 = vmatpush1.msra.mxu0 %v810
        %1492 = vmatprep.subr.mxu0 0.0
        %1493 = vmatpush1.msra.mxu0 %v811
        %1494 = vmatprep.subr.mxu0 0.0
        %1495 = vmatpush1.msra.mxu0 %v812
        %1496 = vmatprep.subr.mxu0 0.0
        %1497 = vmatpush1.msra.mxu0 %v813
        %1498 = vmatprep.subr.mxu0 0.0
        %1499 = vmatpush1.msra.mxu0 %v814
        %1500 = vmatprep.subr.mxu0 0.0
        %1501 = vmatpush1.msra.mxu0 %v815
        %1502 = vmatprep.subr.mxu0 0.0
        %1503 = vmatpush1.msra.mxu0 %v816
        %1504 = vmatprep.subr.mxu0 0.0
        %1505 = vmatpush1.msra.mxu0 %v817
        %1506 = vmatprep.subr.mxu0 0.0
        %1507 = vmatpush1.msra.mxu0 %v818
        %1508 = vmatprep.subr.mxu0 0.0
        %1509 = vmatpush1.msra.mxu0 %v819
        %1510 = vmatprep.subr.mxu0 0.0
        %1511 = vmatpush1.msra.mxu0 %v820
        %1512 = vmatprep.subr.mxu0 0.0
        %1513 = vmatpush1.msra.mxu0 %v821
        %1514 = vmatprep.subr.mxu0 0.0
        %1515 = vmatpush1.msra.mxu0 %v822
        %1516 = vmatprep.subr.mxu0 0.0
        %1517 = vmatpush1.msra.mxu0 0.0
        %1518 = vmatprep.subr.mxu0 0.0
        %1519 = vmatpush1.msra.mxu0 0.0
        %1520 = vmatprep.subr.mxu0 0.0
        %1521 = vmatpush1.msra.mxu0 0.0
        %1522 = vmatprep.subr.mxu0 0.0
        %1523 = vmatpush1.msra.mxu0 0.0
        %1524 = vmatprep.subr.mxu0 0.0
        %1525 = vmatpush1.msra.mxu0 0.0
        %1526 = vmatprep.subr.mxu0 0.0
        %1527 = vmatpush1.msra.mxu0 0.0
        %1528 = vmatprep.subr.mxu0 0.0
        %1529 = vmatpush1.msra.mxu0 0.0
        %1530 = vmatprep.subr.mxu0 0.0
        %1531 = vmatpush1.msra.mxu0 0.0
        %1532 = vmatprep.subr.mxu0 0.0
        %1533 = vmatpush1.msra.mxu0 0.0
        %1534 = vmatprep.subr.mxu0 0.0
        %1535 = vmatpush1.msra.mxu0 0.0
        %1536 = vmatprep.subr.mxu0 0.0
        %1537 = vmatpush1.msra.mxu0 0.0
        %1538 = vmatprep.subr.mxu0 0.0
        %1539 = vmatpush1.msra.mxu0 0.0
        %1540 = vmatprep.subr.mxu0 0.0
        %1541 = vmatpush1.msra.mxu0 0.0
        %1542 = vmatprep.subr.mxu0 0.0
        %1543 = vmatpush1.msra.mxu0 0.0
        %1544 = vmatprep.subr.mxu0 0.0
        %1545 = vmatpush1.msra.mxu0 0.0
        %1546 = vmatprep.subr.mxu0 0.0
        %1547 = vmatpush1.msra.mxu0 0.0
        %1548 = vmatprep.mubr.f32.mxu0 0.0
        %1549 = vmatmul.mubr.f32.gmra.mrb[0].mxu0 %v1483
        %v1550 = vpop.f32.mrb[0].mxu0
        %v1551 = vadd.f32 0.0, %v1550
        %v1552 = vpop.f32.mrb[0].mxu0
        %1553 = vdwg.mxu0
        %v1555 = vsel %vm1216, %v825, 0
        %1557 = vmatprep.subr.mxu0 0.0
        %1558 = vmatpush1.msra.mxu0 %v1551
        %1559 = vmatprep.subr.mxu0 0.0
        %1560 = vmatpush1.msra.mxu0 0.0
        %1561 = vmatprep.subr.mxu0 0.0
        %1562 = vmatpush1.msra.mxu0 0.0
        %1563 = vmatprep.subr.mxu0 0.0
        %1564 = vmatpush1.msra.mxu0 0.0
        %1565 = vmatprep.subr.mxu0 0.0
        %1566 = vmatpush1.msra.mxu0 0.0
        %1567 = vmatprep.subr.mxu0 0.0
        %1568 = vmatpush1.msra.mxu0 0.0
        %1569 = vmatprep.subr.mxu0 0.0
        %1570 = vmatpush1.msra.mxu0 0.0
        %1571 = vmatprep.subr.mxu0 0.0
        %1572 = vmatpush1.msra.mxu0 0.0
        %1573 = vmatprep.subr.mxu0 0.0
        %1574 = vmatpush1.msra.mxu0 0.0
        %1575 = vmatprep.subr.mxu0 0.0
        %1576 = vmatpush1.msra.mxu0 0.0
        %1577 = vmatprep.subr.mxu0 0.0
        %1578 = vmatpush1.msra.mxu0 0.0
        %1579 = vmatprep.subr.mxu0 0.0
        %1580 = vmatpush1.msra.mxu0 0.0
        %1581 = vmatprep.subr.mxu0 0.0
        %1582 = vmatpush1.msra.mxu0 0.0
        %1583 = vmatprep.subr.mxu0 0.0
        %1584 = vmatpush1.msra.mxu0 0.0
        %1585 = vmatprep.subr.mxu0 0.0
        %1586 = vmatpush1.msra.mxu0 0.0
        %1587 = vmatprep.subr.mxu0 0.0
        %1588 = vmatpush1.msra.mxu0 0.0
        %1589 = vmatprep.subr.mxu0 0.0
        %1590 = vmatpush1.msra.mxu0 0.0
        %1591 = vmatprep.subr.mxu0 0.0
        %1592 = vmatpush1.msra.mxu0 0.0
        %1593 = vmatprep.subr.mxu0 0.0
        %1594 = vmatpush1.msra.mxu0 0.0
        %1595 = vmatprep.subr.mxu0 0.0
        %1596 = vmatpush1.msra.mxu0 0.0
        %1597 = vmatprep.subr.mxu0 0.0
        %1598 = vmatpush1.msra.mxu0 0.0
        %1599 = vmatprep.subr.mxu0 0.0
        %1600 = vmatpush1.msra.mxu0 0.0
        %1601 = vmatprep.subr.mxu0 0.0
        %1602 = vmatpush1.msra.mxu0 0.0
        %1603 = vmatprep.subr.mxu0 0.0
        %1604 = vmatpush1.msra.mxu0 0.0
        %1605 = vmatprep.subr.mxu0 0.0
        %1606 = vmatpush1.msra.mxu0 0.0
        %1607 = vmatprep.subr.mxu0 0.0
        %1608 = vmatpush1.msra.mxu0 0.0
        %1609 = vmatprep.subr.mxu0 0.0
        %1610 = vmatpush1.msra.mxu0 0.0
        %1611 = vmatprep.subr.mxu0 0.0
        %1612 = vmatpush1.msra.mxu0 0.0
        %1613 = vmatprep.subr.mxu0 0.0
        %1614 = vmatpush1.msra.mxu0 0.0
        %1615 = vmatprep.subr.mxu0 0.0
        %1616 = vmatpush1.msra.mxu0 0.0
        %1617 = vmatprep.subr.mxu0 0.0
        %1618 = vmatpush1.msra.mxu0 0.0
        %1619 = vmatprep.subr.mxu0 0.0
        %1620 = vmatpush1.msra.mxu0 0.0
        %1621 = vmatprep.mubr.f32.mxu0 0.0
        %1622 = vmatmul.mubr.f32.gmra.mrb[0].mxu0 %v1555
        %v1623 = vpop.f32.mrb[0].mxu0
        %v1624 = vadd.f32 0.0, %v1623
        %v1625 = vpop.f32.mrb[0].mxu0
        %1626 = vdwg.mxu0
        %v1627 = vadd.f32 %v1360, %v1624
        %v1628 = vld [vmem:[%s11] sm:$0xf]
        %v1629 = vmul.f32 %v1627, %v1628
        %v1630 = vld [vmem:[%s12] sm:$0xf]
        %v1631 = vadd.f32 %v1629, %v1630
        %v1632 = vmax.f32 %v1631, 0.0
        %v1633 = vld [vmem:[%s13] sm:$0xff]
        %v1634 = vld [vmem:[%s13 + $0x8] sm:$0xff]
        %v1635 = vld [vmem:[%s13 + $0x10] sm:$0xff]
        %v1637 = vsel %vm723, %v1633, 0
        %v1640 = vsel %vm723, %v1634, 0
        %v1643 = vsel %vm723, %v1635, 0
        %vm1645 = vcmask 1043456
        %v1647 = vsel %vm1645, %v1632, 0
        %1649 = vmatprep.subr.mxu0 0.0
        %1650 = vmatpush1.msra.mxu0 %v1647
        %1651 = vmatprep.subr.mxu0 0.0
        %1652 = vmatpush1.msra.mxu0 0.0
        %1653 = vmatprep.subr.mxu0 0.0
        %1654 = vmatpush1.msra.mxu0 0.0
        %1655 = vmatprep.subr.mxu0 0.0
        %1656 = vmatpush1.msra.mxu0 0.0
        %1657 = vmatprep.subr.mxu0 0.0
        %1658 = vmatpush1.msra.mxu0 0.0
        %1659 = vmatprep.subr.mxu0 0.0
        %1660 = vmatpush1.msra.mxu0 0.0
        %1661 = vmatprep.subr.mxu0 0.0
        %1662 = vmatpush1.msra.mxu0 0.0
        %1663 = vmatprep.subr.mxu0 0.0
        %1664 = vmatpush1.msra.mxu0 0.0
        %1665 = vmatprep.subr.mxu0 0.0
        %1666 = vmatpush1.msra.mxu0 0.0
        %1667 = vmatprep.subr.mxu0 0.0
        %1668 = vmatpush1.msra.mxu0 0.0
        %1669 = vmatprep.subr.mxu0 0.0
        %1670 = vmatpush1.msra.mxu0 0.0
        %1671 = vmatprep.subr.mxu0 0.0
        %1672 = vmatpush1.msra.mxu0 0.0
        %1673 = vmatprep.subr.mxu0 0.0
        %1674 = vmatpush1.msra.mxu0 0.0
        %1675 = vmatprep.subr.mxu0 0.0
        %1676 = vmatpush1.msra.mxu0 0.0
        %1677 = vmatprep.subr.mxu0 0.0
        %1678 = vmatpush1.msra.mxu0 0.0
        %1679 = vmatprep.subr.mxu0 0.0
        %1680 = vmatpush1.msra.mxu0 0.0
        %1681 = vmatprep.subr.mxu0 0.0
        %1682 = vmatpush1.msra.mxu0 0.0
        %1683 = vmatprep.subr.mxu0 0.0
        %1684 = vmatpush1.msra.mxu0 0.0
        %1685 = vmatprep.subr.mxu0 0.0
        %1686 = vmatpush1.msra.mxu0 0.0
        %1687 = vmatprep.subr.mxu0 0.0
        %1688 = vmatpush1.msra.mxu0 0.0
        %1689 = vmatprep.subr.mxu0 0.0
        %1690 = vmatpush1.msra.mxu0 0.0
        %1691 = vmatprep.subr.mxu0 0.0
        %1692 = vmatpush1.msra.mxu0 0.0
        %1693 = vmatprep.subr.mxu0 0.0
        %1694 = vmatpush1.msra.mxu0 0.0
        %1695 = vmatprep.subr.mxu0 0.0
        %1696 = vmatpush1.msra.mxu0 0.0
        %1697 = vmatprep.subr.mxu0 0.0
        %1698 = vmatpush1.msra.mxu0 0.0
        %1699 = vmatprep.subr.mxu0 0.0
        %1700 = vmatpush1.msra.mxu0 0.0
        %1701 = vmatprep.subr.mxu0 0.0
        %1702 = vmatpush1.msra.mxu0 0.0
        %1703 = vmatprep.subr.mxu0 0.0
        %1704 = vmatpush1.msra.mxu0 0.0
        %1705 = vmatprep.subr.mxu0 0.0
        %1706 = vmatpush1.msra.mxu0 0.0
        %1707 = vmatprep.subr.mxu0 0.0
        %1708 = vmatpush1.msra.mxu0 0.0
        %1709 = vmatprep.subr.mxu0 0.0
        %1710 = vmatpush1.msra.mxu0 0.0
        %1711 = vmatprep.subr.mxu0 0.0
        %1712 = vmatpush1.msra.mxu0 0.0
        %1713 = vmatprep.mubr.f32.mxu0 0.0
        %1714 = vmatmul.mubr.f32.gmra.mrb[0].mxu0 %v1637
        %v1715 = vpop.f32.mrb[0].mxu0
        %v1716 = vadd.f32 0.0, %v1715
        %v1717 = vpop.f32.mrb[0].mxu0
        %1718 = vmatprep.mubr.f32.mxu0 0.0
        %1719 = vmatmul.mubr.f32.gmra.mrb[0].mxu0 %v1640
        %v1720 = vpop.f32.mrb[0].mxu0
        %v1721 = vadd.f32 0.0, %v1720
        %v1722 = vpop.f32.mrb[0].mxu0
        %1723 = vmatprep.mubr.f32.mxu0 0.0
        %1724 = vmatmul.mubr.f32.gmra.mrb[0].mxu0 %v1643
        %v1725 = vpop.f32.mrb[0].mxu0
        %v1726 = vadd.f32 0.0, %v1725
        %v1727 = vpop.f32.mrb[0].mxu0
        %1728 = vdwg.mxu0
        %v1729 = vld [vmem:[%s14] sm:$0xff]
        %v1730 = vld [vmem:[%s14 + $0x8] sm:$0xff]
        %v1731 = vld [vmem:[%s14 + $0x10] sm:$0xff]
        %v1732 = vmul.f32 %v1716, %v1729
        %v1733 = vmul.f32 %v1721, %v1730
        %v1734 = vmul.f32 %v1726, %v1731
        %v1735 = vld [vmem:[%s15] sm:$0xff]
        %v1736 = vld [vmem:[%s15 + $0x8] sm:$0xff]
        %v1737 = vld [vmem:[%s15 + $0x10] sm:$0xff]
        %v1738 = vadd.f32 %v1732, %v1735
        %v1739 = vadd.f32 %v1733, %v1736
        %v1740 = vadd.f32 %v1734, %v1737
        %v1741 = vsub.f32 0.0, %v1738
        %v1742 = vsub.f32 0.0, %v1739
        %v1743 = vsub.f32 0.0, %v1740
        %v1744 = vmul.f32 %v1741, 1.442695
        %v1745 = vpow.pop %v1744
        %v1746 = vmul.f32 %v1742, 1.442695
        %v1747 = vpow.pop %v1746
        %v1748 = vmul.f32 %v1743, 1.442695
        %v1749 = vpow.pop %v1748
        %v1750 = vadd.f32 %v1745, 1.0
        %v1751 = vadd.f32 %v1747, 1.0
        %v1752 = vadd.f32 %v1749, 1.0
        %v1753 = vrcp.pop %v1750
        %v1754 = vrcp.pop %v1751
        %v1755 = vrcp.pop %v1752
        %v1756 = vld [vmem:[%s17] sm:$0x1]
        %vm1757 = vcmask 7168
        %v1759 = vsel %vm1757, %v1753, 0
        %v1762 = vsel %vm1757, %v1754, 0
        %v1765 = vsel %vm1757, %v1755, 0
        %vm1767 = vcmask 1040384
        %v1769 = vsel %vm1767, %v1756, 0
        %1771 = vmatprep.subr.mxu0 0.0
        %1772 = vmatpush1.msra.mxu0 %v1769
        %1773 = vmatprep.subr.mxu0 0.0
        %1774 = vmatpush1.msra.mxu0 0.0
        %1775 = vmatprep.subr.mxu0 0.0
        %1776 = vmatpush1.msra.mxu0 0.0
        %1777 = vmatprep.subr.mxu0 0.0
        %1778 = vmatpush1.msra.mxu0 0.0
        %1779 = vmatprep.subr.mxu0 0.0
        %1780 = vmatpush1.msra.mxu0 0.0
        %1781 = vmatprep.subr.mxu0 0.0
        %1782 = vmatpush1.msra.mxu0 0.0
        %1783 = vmatprep.subr.mxu0 0.0
        %1784 = vmatpush1.msra.mxu0 0.0
        %1785 = vmatprep.subr.mxu0 0.0
        %1786 = vmatpush1.msra.mxu0 0.0
        %1787 = vmatprep.subr.mxu0 0.0
        %1788 = vmatpush1.msra.mxu0 0.0
        %1789 = vmatprep.subr.mxu0 0.0
        %1790 = vmatpush1.msra.mxu0 0.0
        %1791 = vmatprep.subr.mxu0 0.0
        %1792 = vmatpush1.msra.mxu0 0.0
        %1793 = vmatprep.subr.mxu0 0.0
        %1794 = vmatpush1.msra.mxu0 0.0
        %1795 = vmatprep.subr.mxu0 0.0
        %1796 = vmatpush1.msra.mxu0 0.0
        %1797 = vmatprep.subr.mxu0 0.0
        %1798 = vmatpush1.msra.mxu0 0.0
        %1799 = vmatprep.subr.mxu0 0.0
        %1800 = vmatpush1.msra.mxu0 0.0
        %1801 = vmatprep.subr.mxu0 0.0
        %1802 = vmatpush1.msra.mxu0 0.0
        %1803 = vmatprep.subr.mxu0 0.0
        %1804 = vmatpush1.msra.mxu0 0.0
        %1805 = vmatprep.subr.mxu0 0.0
        %1806 = vmatpush1.msra.mxu0 0.0
        %1807 = vmatprep.subr.mxu0 0.0
        %1808 = vmatpush1.msra.mxu0 0.0
        %1809 = vmatprep.subr.mxu0 0.0
        %1810 = vmatpush1.msra.mxu0 0.0
        %1811 = vmatprep.subr.mxu0 0.0
        %1812 = vmatpush1.msra.mxu0 0.0
        %1813 = vmatprep.subr.mxu0 0.0
        %1814 = vmatpush1.msra.mxu0 0.0
        %1815 = vmatprep.subr.mxu0 0.0
        %1816 = vmatpush1.msra.mxu0 0.0
        %1817 = vmatprep.subr.mxu0 0.0
        %1818 = vmatpush1.msra.mxu0 0.0
        %1819 = vmatprep.subr.mxu0 0.0
        %1820 = vmatpush1.msra.mxu0 0.0
        %1821 = vmatprep.subr.mxu0 0.0
        %1822 = vmatpush1.msra.mxu0 0.0
        %1823 = vmatprep.subr.mxu0 0.0
        %1824 = vmatpush1.msra.mxu0 0.0
        %1825 = vmatprep.subr.mxu0 0.0
        %1826 = vmatpush1.msra.mxu0 0.0
        %1827 = vmatprep.subr.mxu0 0.0
        %1828 = vmatpush1.msra.mxu0 0.0
        %1829 = vmatprep.subr.mxu0 0.0
        %1830 = vmatpush1.msra.mxu0 0.0
        %1831 = vmatprep.subr.mxu0 0.0
        %1832 = vmatpush1.msra.mxu0 0.0
        %1833 = vmatprep.subr.mxu0 0.0
        %1834 = vmatpush1.msra.mxu0 0.0
        %1835 = vmatprep.mubr.f32.mxu0 0.0
        %1836 = vmatmul.mubr.f32.gmra.mrb[0].mxu0 %v1759
        %v1837 = vpop.f32.mrb[0].mxu0
        %v1838 = vadd.f32 0.0, %v1837
        %v1839 = vpop.f32.mrb[0].mxu0
        %1840 = vmatprep.mubr.f32.mxu0 0.0
        %1841 = vmatmul.mubr.f32.gmra.mrb[0].mxu0 %v1762
        %v1842 = vpop.f32.mrb[0].mxu0
        %v1843 = vadd.f32 0.0, %v1842
        %v1844 = vpop.f32.mrb[0].mxu0
        %1845 = vmatprep.mubr.f32.mxu0 0.0
        %1846 = vmatmul.mubr.f32.gmra.mrb[0].mxu0 %v1765
        %v1847 = vpop.f32.mrb[0].mxu0
        %v1848 = vadd.f32 0.0, %v1847
        %v1849 = vpop.f32.mrb[0].mxu0
        %1850 = vdwg.mxu0
        %v1851 = vmul.f32 %v941, %v1838
        %v1852 = vadd.f32 %v707, %v1851
        %v1853 = vmul.f32 %v1132, %v1843
        %v1854 = vadd.f32 %v1852, %v1853
        %v1855 = vmul.f32 %v1470, %v1848
        %v1856 = vadd.f32 %v1854, %v1855
        %1857 = vst [vmem:[%s618] sm:$0xff] %v1856
        %s1858 = sand.u32 %s423, 1
        %s1859 = scalar_lea.sflag [#allocation5], %s1858
        %s1860 = sand.u32 %s423, 1
        %s1861 = smul.addr %s1860, 8
        %s1862 = scalar_lea.vmem [#allocation4], %s1861
        // Predicated region
        $region134: #{tpu_custom_call.1} parent=128 // pred_check
          %p1863 = pneg %p433
        $region135: #{tpu_custom_call.1} parent=128 // pred_check_branch
          %1865 = sbr.rel (%p1863) target = $region137
        $region136: #{tpu_custom_call.1} parent=128 // pred_region
          %s1867 = ssub.s32 128, 128
          %1868 = vsyncadd %s1859, %s1867
          %s1869 = smul.addr %s32, 128
          %s1870 = scalar_lea.hbm %s18, %s1869
          %s1872 = sshll.u32 %s1862, 4
          %s1873 = int_to_ptr.vmem [resolvable:$true] %s1872
          %1875 = dma.vmem_to_hbm [thread:$0]  %s1873, 128, %s1870, %s1859
        $region137: #{tpu_custom_call.1} parent=128 // pred_fallthru
          _
      $region129: #{tpu_custom_call.1} parent=5 // pred_fallthru
        _
      %p1876 = scmp.le.s32.totalorder 2, %s27
      // Predicated region
      $region138: #{tpu_custom_call.1} parent=5 // pred_check
        %p1877 = pneg %p1876
      $region139: #{tpu_custom_call.1} parent=5 // pred_check_branch
        %1879 = sbr.rel (%p1877) target = $region141
      $region140: #{tpu_custom_call.1} parent=5 // pred_region
        %s1880 = ssub.s32 %s27, 2
        // Predicated region
        $region142: #{tpu_custom_call.1} parent=140 // pred_check
          %p1881 = pneg %p439
        $region143: #{tpu_custom_call.1} parent=140 // pred_check_branch
          %1883 = sbr.rel (%p1881) target = $region145
        $region144: #{tpu_custom_call.1} parent=140 // pred_region
          %s1884 = sand.u32 %s424, 1
          %s1885 = scalar_lea.sflag [#allocation5], %s1884
          %s1886 = sand.u32 %s424, 1
          %s1887 = smul.addr %s1886, 8
          %s1888 = scalar_lea.vmem [#allocation4], %s1887
          %1889 = dma.done %s1885, 128
        $region145: #{tpu_custom_call.1} parent=140 // pred_fallthru
          _
      $region141: #{tpu_custom_call.1} parent=5 // pred_fallthru
        _
    $region6: #{tpu_custom_call.1} parent=1 // loop_footer
      %s31 = sadd.s32 1, %s27
    $region7: #{tpu_custom_call.1} parent=1 // loop_footer_branch
      %26 = sbr.rel target = $region3
    $region8: #{tpu_custom_call.1} parent=1 // loop_exit
      _
    %1890 = vsyncpa [#allocation5], 1
    %s1891 = scalar_lea.sflag [#allocation5], 1
    %1892 = vsyncpa %s1891, 1

</llo_original>
